<compile_context>
chip_gen: v6e
topology: v6e:2x2x1
jax: 0.10.0
libtpu: 0.0.40
codegen_flags: <defaults>
</compile_context>

<pallas_src>
import functools

import jax
import jax.numpy as jnp
from jax.experimental import pallas as pl
from jax.experimental.pallas import tpu as pltpu

# Fixed module hyper-parameters (5x5 conv, pad 2, stride 1, 2x2 max-pool).
KH = KW = 5
PAD = 2
C1 = 16          # conv1 output channels
C2 = 32          # conv2 output channels
NC_PAD = 128     # classes padded to a full 128-lane slab


# ----------------------------------------------------------------------------
# Banded ("Toeplitz") conv weights: a KxK conv over the width dimension becomes
# per-row matmuls   out_row(h) = sum_ky  in_row(h+ky-offset) @ band[ky]
# with  band[ky][p*Cin+ci, w, co] = wconv[ky, p-w+offset, ci, co]  (zero outside
# the kernel support); width zero-padding is implicit.
# Returns (KH, n_in*Cin, w_out, Cout).
# ----------------------------------------------------------------------------
def _conv_band_weights(wconv, w_out, n_in, offset):
    KH_, KW_, Cin, Cout = wconv.shape
    k = jnp.arange(KW_)
    p = jnp.arange(n_in)
    w = jnp.arange(w_out)
    sel = (p[None, :, None] == (w[None, None, :] + k[:, None, None] - offset))
    sel = sel.astype(jnp.float32)                                 # (KW, n_in, w_out)
    band = jnp.einsum("kpw,ykio->ypiwo", sel, wconv.astype(jnp.float32))
    return band.reshape(KH_, n_in * Cin, w_out, Cout)


def _pool_split_cols(band):
    """Reorder the output-width axis so the two 2x2-pool partners sit in
    opposite 128-wide halves: (..., w_out, Cout) -> (..., w_out*Cout) with
    column index (w%2)*(w_out//2)*Cout + (w//2)*Cout + c.  The w-pool then
    becomes a max of the two lane-aligned halves."""
    *lead, w_out, cout = band.shape
    b = band.reshape(*lead, w_out // 2, 2, cout)
    b = jnp.swapaxes(b, -3, -2)
    return b.reshape(*lead, w_out * cout)


def _pick_btile(n):
    # Biggest per-step batch (fills MXU M rows, amortizes grid overhead).
    # On v7x callers may pass b_tile explicitly to keep grid length even so
    # both TensorCores get work under "parallel" semantics.
    for bt in (8, 4, 2, 1):
        if n % bt == 0:
            return bt
    return 1


# ----------------------------------------------------------------------------
# Fused kernel: B_TILE images per grid step.
# Row bookkeeping (only contiguous, aligned slices; no relayouts):
#  * conv1 LHS rows are ordered (h%4, h//4, image) so the 2x2 h-pool is an
#    elementwise max of contiguous row groups.
#  * w-pools are maxima of the two 128-wide column halves (partner split is
#    folded into the banded weights' output-column order).
#  * layer-2 handoff rows hold [even pooled row || odd pooled row] along lanes,
#    H-halo rows are zero; conv2 reads row-offset slices of that buffer.
# ----------------------------------------------------------------------------
def _cnn_fused_kernel(x_ref, w1_ref, b1_ref, w2_ref, b2_ref, wl_ref, bl_ref,
                      o_ref, xp2_ref, *, q1, btile, p1, p2):
    f32, bf16 = jnp.float32, jnp.bfloat16
    BQ = q1 * btile                 # rows per conv1 group = pooled rows per step
    NS = KH // 2 + 1                # conv2 slot offsets (3 for a 5-tap kernel)
    hp1 = p1 // 2                   # pooled layer-1 row width (128)
    hp2 = p2 // 2                   # pooled layer-2 row width (128)

    # -- layer 1: 5x5 conv as ONE matmul (height taps folded along K by the
    #    wrapper-side im2row).  Rows ordered (h%4 group, h//4, image).
    y1 = jnp.dot(x_ref[0], w1_ref[...], preferred_element_type=f32)   # (4*BQ, p1)

    # 2x2 max-pool; bias+ReLU commute with max (per-channel bias), applied once.
    p_ev = jnp.maximum(y1[0 * BQ:1 * BQ], y1[1 * BQ:2 * BQ])   # pooled rows 0,2,..
    p_od = jnp.maximum(y1[2 * BQ:3 * BQ], y1[3 * BQ:4 * BQ])   # pooled rows 1,3,..
    a_ev = jnp.maximum(jnp.maximum(p_ev[:, :hp1], p_ev[:, hp1:]) + b1_ref[...],
                       0.0).astype(bf16)
    a_od = jnp.maximum(jnp.maximum(p_od[:, :hp1], p_od[:, hp1:]) + b1_ref[...],
                       0.0).astype(bf16)

    # -- handoff: H-padded pooled rows, [even slot || odd slot] along lanes.
    #    Halo rows are re-zeroed each step (cheap, megacore-safe); data rows are
    #    fully rewritten every step.
    halo = jnp.zeros((btile, 2 * hp1), bf16)
    xp2_ref[0:btile, :] = halo
    xp2_ref[(q1 + 1) * btile:(q1 + 2) * btile, :] = halo
    xp2_ref[btile:btile + BQ, :] = jnp.concatenate([a_ev, a_od], axis=1)

    # -- layer 2: 5x5 conv as NS=3 matmuls; K stacks [even||odd] source rows,
    #    output lanes stack the two output-row parities.
    acc2 = jnp.dot(xp2_ref[0:BQ, :], w2_ref[0], preferred_element_type=f32)
    for s in range(1, NS):
        acc2 = acc2 + jnp.dot(xp2_ref[s * btile:s * btile + BQ, :], w2_ref[s],
                              preferred_element_type=f32)          # (BQ, 2*p2)

    # 2x2 max-pool (h-pool = parity halves, w-pool = 128-wide halves) + bias+ReLU.
    zh = jnp.maximum(acc2[:, :p2], acc2[:, p2:])
    m2 = jnp.maximum(jnp.maximum(zh[:, :hp2], zh[:, hp2:]) + b2_ref[...],
                     0.0).astype(bf16)                             # (BQ, 128)

    # -- final Linear: q1 accumulating (btile, 128)@(128, 128) matmuls + bias.
    out = jnp.dot(m2[0:btile, :], wl_ref[0], preferred_element_type=f32)
    for j in range(1, q1):
        out = out + jnp.dot(m2[j * btile:(j + 1) * btile, :], wl_ref[j],
                            preferred_element_type=f32)
    o_ref[0] = out + bl_ref[...]


# ----------------------------------------------------------------------------
# Wrapper: NCHW input -> (N, no_classes) logits.
# ----------------------------------------------------------------------------
def cnn_forward(x_nchw, params, b_tile=None):
    N, Cin, H, W = x_nchw.shape
    assert H % 4 == 0 and W % 4 == 0, "kernel assumes H, W divisible by 4"
    w1, b1 = params["w1"], params["b1"]
    w2, b2 = params["w2"], params["b2"]
    wl, bl = params["wl"], params["bl"]
    NC = bl.shape[0]
    q1 = H // 4
    Wo1, Wo2, Ho2 = W // 2, W // 4, H // 4
    if b_tile is None:
        b_tile = _pick_btile(N)
    assert N % b_tile == 0
    G = N // b_tile
    M1 = H * b_tile                 # conv1 matmul rows per step (= 4*q1*b_tile)
    KWC = KH * W * Cin              # conv1 folded K (= 5*W*Cin)
    p1 = W * C1                     # conv1 per-parity output width
    p2 = Wo1 * C2                   # conv2 per-parity output width
    NS = KH // 2 + 1

    # conv1 LHS: im2row over the 5 height taps (H-halo zero-padded here), rows
    # ordered (h%4, h//4, image-in-tile) so pool partners are contiguous groups.
    x = jnp.transpose(x_nchw, (0, 2, 3, 1)).astype(jnp.float32).reshape(N, H, W * Cin)
    xpad = jnp.pad(x, ((0, 0), (PAD, PAD), (0, 0)))
    win = xpad[:, jnp.arange(H)[:, None] + jnp.arange(KH)[None, :], :]  # (N,H,KH,W*Cin)
    win = win.reshape(G, b_tile, q1, 4, KWC)
    xg = jnp.transpose(win, (0, 3, 2, 1, 4)).reshape(G, M1, KWC).astype(jnp.bfloat16)

    # conv1 weights: width-banded taps stacked along K; output columns permuted
    # to (pool-partner, pooled-w, channel).  Bias applied after pooling.
    band1 = _conv_band_weights(w1, w_out=W, n_in=W, offset=PAD)
    w1f = _pool_split_cols(band1).reshape(KWC, p1).astype(jnp.bfloat16)
    b1r = jnp.tile(b1.astype(jnp.float32), Wo1)[None, :]                # (1, 128)

    # conv2 weights: per slot offset s, [even||odd] pooled sources along K and
    # the two output-row parities along N; output columns pool-partner permuted.
    band2 = _pool_split_cols(
        _conv_band_weights(w2, w_out=Wo1, n_in=Wo1, offset=PAD))        # (KH,128,256)
    khalf = Wo1 * C1
    w2f = jnp.zeros((NS, 2 * khalf, 2 * p2), jnp.float32)
    for s in range(NS):
        for q in range(2):
            ke, ko = 2 * s - q, 2 * s + 1 - q
            if 0 <= ke < KH:
                w2f = w2f.at[s, :khalf, q * p2:(q + 1) * p2].set(band2[ke])
            if 0 <= ko < KH:
                w2f = w2f.at[s, khalf:, q * p2:(q + 1) * p2].set(band2[ko])
    w2f = w2f.astype(jnp.bfloat16)
    b2r = jnp.tile(b2.astype(jnp.float32), Wo2)[None, :]                # (1, 128)

    # Linear weights: fold the PyTorch NCHW flatten; pad classes to 128 lanes.
    wl4 = wl.astype(jnp.float32).reshape(C2, Ho2, Wo2, NC)
    wl4 = jnp.transpose(wl4, (1, 2, 0, 3)).reshape(Ho2, Wo2 * C2, NC)
    wlb = jnp.zeros((Ho2, Wo2 * C2, NC_PAD), jnp.float32).at[:, :, :NC].set(wl4)
    wlb = wlb.astype(jnp.bfloat16)
    blp = jnp.zeros((1, NC_PAD), jnp.float32).at[0, :NC].set(bl.astype(jnp.float32))

    out = pl.pallas_call(
        functools.partial(_cnn_fused_kernel, q1=q1, btile=b_tile, p1=p1, p2=p2),
        out_shape=jax.ShapeDtypeStruct((G, b_tile, NC_PAD), jnp.float32),
        grid=(G,),
        in_specs=[
            pl.BlockSpec((1, M1, KWC), lambda g: (g, 0, 0)),
            pl.BlockSpec(w1f.shape, lambda g: (0, 0)),
            pl.BlockSpec(b1r.shape, lambda g: (0, 0)),
            pl.BlockSpec(w2f.shape, lambda g: (0, 0, 0)),
            pl.BlockSpec(b2r.shape, lambda g: (0, 0)),
            pl.BlockSpec(wlb.shape, lambda g: (0, 0, 0)),
            pl.BlockSpec(blp.shape, lambda g: (0, 0)),
        ],
        out_specs=pl.BlockSpec((1, b_tile, NC_PAD), lambda g: (g, 0, 0)),
        scratch_shapes=[
            pltpu.VMEM(((q1 + 2) * b_tile, 2 * Wo1 * C1), jnp.bfloat16),
        ],
        compiler_params=pltpu.CompilerParams(
            dimension_semantics=("parallel",)),
    )(xg, w1f, b1r, w2f, b2r, wlb, blp)
    return out.reshape(N, NC_PAD)[:, :NC]


def init_params(key, in_channels, H, W, no_classes):
    k1, k2, k3, k4, k5, k6 = jax.random.split(key, 6)
    fan1 = 5 * 5 * in_channels
    fan2 = 5 * 5 * C1
    feat = C2 * (H // 4) * (W // 4)
    return dict(
        w1=jax.random.normal(k1, (5, 5, in_channels, C1), jnp.float32) / fan1 ** 0.5,
        b1=jax.random.normal(k2, (C1,), jnp.float32) * 0.01,
        w2=jax.random.normal(k3, (5, 5, C1, C2), jnp.float32) / fan2 ** 0.5,
        b2=jax.random.normal(k4, (C2,), jnp.float32) * 0.01,
        wl=jax.random.normal(k5, (feat, no_classes), jnp.float32) / feat ** 0.5,
        bl=jax.random.normal(k6, (no_classes,), jnp.float32) * 0.01,
    )


# Pure-JAX f32 reference (lax.conv) used only as a correctness check.
def reference_forward(x_nchw, p):
    x = jnp.transpose(x_nchw, (0, 2, 3, 1)).astype(jnp.float32)

    def block(x, w, b):
        y = jax.lax.conv_general_dilated(
            x, w, window_strides=(1, 1), padding=[(PAD, PAD), (PAD, PAD)],
            dimension_numbers=("NHWC", "HWIO", "NHWC"))
        y = jnp.maximum(y + b, 0.0)
        N, H, W, C = y.shape
        return y.reshape(N, H // 2, 2, W // 2, 2, C).max(axis=(2, 4))

    y = block(x, p["w1"], p["b1"])
    y = block(y, p["w2"], p["b2"])
    N = y.shape[0]
    feat = jnp.transpose(y, (0, 3, 1, 2)).reshape(N, -1)   # PyTorch NCHW flatten
    return feat @ p["wl"] + p["bl"]


if __name__ == "__main__":
    # input_shape = (H, W, C) = (16, 16, 4), no_classes = 10, batch = 2
    B, C, H, W = 2, 4, 16, 16
    NO_CLASSES = 10

    key = jax.random.PRNGKey(0)
    kx, kp = jax.random.split(key)
    x = jax.random.normal(kx, (B, C, H, W), jnp.float32)    # NCHW like PyTorch
    params = init_params(kp, C, H, W, NO_CLASSES)

    fwd = jax.jit(cnn_forward)
    out = jax.block_until_ready(fwd(x, params))
    ref = jax.block_until_ready(reference_forward(x, params))

    assert out.shape == (B, NO_CLASSES), out.shape
    # bf16 MXU operands (f32 accumulation) give ~1e-2-level differences vs the
    # pure-f32 reference; genuine indexing bugs would be O(1).
    err = float(jnp.max(jnp.abs(out - ref)))
    assert jnp.allclose(out, ref, atol=5e-2, rtol=5e-2), ("mismatch vs reference", err)
    print("KERNEL_OK")
</pallas_src>

<mosaic_0001>
module attributes {stable_mosaic.version = 11 : i64} {
  func.func @_cnn_fused_kernel(%arg0: i32, %arg1: memref<1x32x320xbf16, #tpu.memory_space<vmem>>, %arg2: memref<320x256xbf16, #tpu.memory_space<vmem>>, %arg3: memref<1x128xf32, #tpu.memory_space<vmem>>, %arg4: memref<3x256x512xbf16, #tpu.memory_space<vmem>>, %arg5: memref<1x128xf32, #tpu.memory_space<vmem>>, %arg6: memref<4x128x128xbf16, #tpu.memory_space<vmem>>, %arg7: memref<1x128xf32, #tpu.memory_space<vmem>>, %arg8: memref<1x2x128xf32, #tpu.memory_space<vmem>>, %arg9: memref<12x256xbf16, #tpu.memory_space<vmem>>) attributes {dimension_semantics = [#tpu.dimension_semantics<parallel>], iteration_bounds = array<i64: 1>, scalar_prefetch = 0 : i64, scratch_operands = 1 : i64, tpu.core_type = #tpu.core_type<tc>, window_params = [{transform_indices = @transform_0, window_bounds = array<i64: 1, 32, 320>}, {pipeline_mode = #tpu.pipeline_mode<synchronous>, transform_indices = @transform_1, window_bounds = array<i64: 320, 256>}, {pipeline_mode = #tpu.pipeline_mode<synchronous>, transform_indices = @transform_2, window_bounds = array<i64: 1, 128>}, {pipeline_mode = #tpu.pipeline_mode<synchronous>, transform_indices = @transform_3, window_bounds = array<i64: 3, 256, 512>}, {pipeline_mode = #tpu.pipeline_mode<synchronous>, transform_indices = @transform_4, window_bounds = array<i64: 1, 128>}, {pipeline_mode = #tpu.pipeline_mode<synchronous>, transform_indices = @transform_5, window_bounds = array<i64: 4, 128, 128>}, {pipeline_mode = #tpu.pipeline_mode<synchronous>, transform_indices = @transform_6, window_bounds = array<i64: 1, 128>}, {transform_indices = @transform_7, window_bounds = array<i64: 1, 2, 128>}]} {
    %c0 = arith.constant 0 : index
    %c0_0 = arith.constant 0 : index
    %c0_1 = arith.constant 0 : index
    %0 = vector.load %arg1[%c0, %c0_0, %c0_1] : memref<1x32x320xbf16, #tpu.memory_space<vmem>>, vector<1x32x320xbf16>
    %1 = vector.shape_cast %0 : vector<1x32x320xbf16> to vector<32x320xbf16>
    %c0_2 = arith.constant 0 : index
    %c0_3 = arith.constant 0 : index
    %2 = vector.load %arg2[%c0_2, %c0_3] : memref<320x256xbf16, #tpu.memory_space<vmem>>, vector<320x256xbf16>
    %cst = arith.constant dense<0.000000e+00> : vector<32x256xf32>
    %3 = tpu.matmul %1, %2, %cst {dimension_numbers = #tpu.dot_dimension_numbers<[1], [0], [0], [1], [0, 0, 1, 1], [], []>} : vector<32x320xbf16>, vector<320x256xbf16>, vector<32x256xf32> -> vector<32x256xf32>
    %4 = vector.extract_strided_slice %3 {offsets = [0, 0], sizes = [8, 256], strides = [1, 1]} : vector<32x256xf32> to vector<8x256xf32>
    %5 = vector.extract_strided_slice %3 {offsets = [8, 0], sizes = [8, 256], strides = [1, 1]} : vector<32x256xf32> to vector<8x256xf32>
    %6 = arith.maximumf %4, %5 : vector<8x256xf32>
    %7 = vector.extract_strided_slice %3 {offsets = [16, 0], sizes = [8, 256], strides = [1, 1]} : vector<32x256xf32> to vector<8x256xf32>
    %8 = vector.extract_strided_slice %3 {offsets = [24, 0], sizes = [8, 256], strides = [1, 1]} : vector<32x256xf32> to vector<8x256xf32>
    %9 = arith.maximumf %7, %8 : vector<8x256xf32>
    %10 = vector.extract_strided_slice %6 {offsets = [0, 0], sizes = [8, 128], strides = [1, 1]} : vector<8x256xf32> to vector<8x128xf32>
    %11 = vector.extract_strided_slice %6 {offsets = [0, 128], sizes = [8, 128], strides = [1, 1]} : vector<8x256xf32> to vector<8x128xf32>
    %12 = arith.maximumf %10, %11 : vector<8x128xf32>
    %c0_4 = arith.constant 0 : index
    %c0_5 = arith.constant 0 : index
    %13 = vector.load %arg3[%c0_4, %c0_5] : memref<1x128xf32, #tpu.memory_space<vmem>>, vector<1x128xf32>
    %14 = vector.broadcast %13 : vector<1x128xf32> to vector<8x128xf32>
    %15 = arith.addf %12, %14 : vector<8x128xf32>
    %cst_6 = arith.constant 0.000000e+00 : f32
    %16 = vector.broadcast %cst_6 : f32 to vector<8x128xf32>
    %17 = arith.maximumf %15, %16 : vector<8x128xf32>
    %18 = arith.truncf %17 : vector<8x128xf32> to vector<8x128xbf16>
    %19 = vector.extract_strided_slice %9 {offsets = [0, 0], sizes = [8, 128], strides = [1, 1]} : vector<8x256xf32> to vector<8x128xf32>
    %20 = vector.extract_strided_slice %9 {offsets = [0, 128], sizes = [8, 128], strides = [1, 1]} : vector<8x256xf32> to vector<8x128xf32>
    %21 = arith.maximumf %19, %20 : vector<8x128xf32>
    %c0_7 = arith.constant 0 : index
    %c0_8 = arith.constant 0 : index
    %22 = vector.load %arg3[%c0_7, %c0_8] : memref<1x128xf32, #tpu.memory_space<vmem>>, vector<1x128xf32>
    %23 = vector.broadcast %22 : vector<1x128xf32> to vector<8x128xf32>
    %24 = arith.addf %21, %23 : vector<8x128xf32>
    %cst_9 = arith.constant 0.000000e+00 : f32
    %25 = vector.broadcast %cst_9 : f32 to vector<8x128xf32>
    %26 = arith.maximumf %24, %25 : vector<8x128xf32>
    %27 = arith.truncf %26 : vector<8x128xf32> to vector<8x128xbf16>
    %cst_10 = arith.constant 0.000000e+00 : bf16
    %28 = vector.broadcast %cst_10 : bf16 to vector<2x256xbf16>
    %c0_11 = arith.constant 0 : index
    %c0_12 = arith.constant 0 : index
    %29 = vector.load %arg9[%c0_11, %c0_12] : memref<12x256xbf16, #tpu.memory_space<vmem>>, vector<2x256xbf16>
    tpu.vector_store %arg9[%c0_11, %c0_12], %28 {strides = array<i32>} : memref<12x256xbf16, #tpu.memory_space<vmem>>, vector<2x256xbf16>,
    %c10 = arith.constant 10 : index
    %c0_13 = arith.constant 0 : index
    %30 = vector.load %arg9[%c10, %c0_13] : memref<12x256xbf16, #tpu.memory_space<vmem>>, vector<2x256xbf16>
    tpu.vector_store %arg9[%c10, %c0_13], %28 {strides = array<i32>} : memref<12x256xbf16, #tpu.memory_space<vmem>>, vector<2x256xbf16>,
    %31 = tpu.concatenate %18, %27 in 1 : vector<8x128xbf16>, vector<8x128xbf16> -> vector<8x256xbf16>
    %c2 = arith.constant 2 : index
    %c0_14 = arith.constant 0 : index
    %32 = vector.load %arg9[%c2, %c0_14] : memref<12x256xbf16, #tpu.memory_space<vmem>>, vector<8x256xbf16>
    tpu.vector_store %arg9[%c2, %c0_14], %31 {strides = array<i32>} : memref<12x256xbf16, #tpu.memory_space<vmem>>, vector<8x256xbf16>,
    %c0_15 = arith.constant 0 : index
    %c0_16 = arith.constant 0 : index
    %33 = vector.load %arg9[%c0_15, %c0_16] : memref<12x256xbf16, #tpu.memory_space<vmem>>, vector<8x256xbf16>
    %c0_17 = arith.constant 0 : index
    %c0_18 = arith.constant 0 : index
    %c0_19 = arith.constant 0 : index
    %34 = vector.load %arg4[%c0_17, %c0_18, %c0_19] : memref<3x256x512xbf16, #tpu.memory_space<vmem>>, vector<1x256x512xbf16>
    %35 = vector.shape_cast %34 : vector<1x256x512xbf16> to vector<256x512xbf16>
    %cst_20 = arith.constant dense<0.000000e+00> : vector<8x512xf32>
    %36 = tpu.matmul %33, %35, %cst_20 {dimension_numbers = #tpu.dot_dimension_numbers<[1], [0], [0], [1], [0, 0, 1, 1], [], []>} : vector<8x256xbf16>, vector<256x512xbf16>, vector<8x512xf32> -> vector<8x512xf32>
    %c2_21 = arith.constant 2 : index
    %c0_22 = arith.constant 0 : index
    %37 = vector.load %arg9[%c2_21, %c0_22] : memref<12x256xbf16, #tpu.memory_space<vmem>>, vector<8x256xbf16>
    %c1 = arith.constant 1 : index
    %c0_23 = arith.constant 0 : index
    %c0_24 = arith.constant 0 : index
    %38 = vector.load %arg4[%c1, %c0_23, %c0_24] : memref<3x256x512xbf16, #tpu.memory_space<vmem>>, vector<1x256x512xbf16>
    %39 = vector.shape_cast %38 : vector<1x256x512xbf16> to vector<256x512xbf16>
    %cst_25 = arith.constant dense<0.000000e+00> : vector<8x512xf32>
    %40 = tpu.matmul %37, %39, %cst_25 {dimension_numbers = #tpu.dot_dimension_numbers<[1], [0], [0], [1], [0, 0, 1, 1], [], []>} : vector<8x256xbf16>, vector<256x512xbf16>, vector<8x512xf32> -> vector<8x512xf32>
    %41 = arith.addf %36, %40 : vector<8x512xf32>
    %c4 = arith.constant 4 : index
    %c0_26 = arith.constant 0 : index
    %42 = vector.load %arg9[%c4, %c0_26] : memref<12x256xbf16, #tpu.memory_space<vmem>>, vector<8x256xbf16>
    %c2_27 = arith.constant 2 : index
    %c0_28 = arith.constant 0 : index
    %c0_29 = arith.constant 0 : index
    %43 = vector.load %arg4[%c2_27, %c0_28, %c0_29] : memref<3x256x512xbf16, #tpu.memory_space<vmem>>, vector<1x256x512xbf16>
    %44 = vector.shape_cast %43 : vector<1x256x512xbf16> to vector<256x512xbf16>
    %cst_30 = arith.constant dense<0.000000e+00> : vector<8x512xf32>
    %45 = tpu.matmul %42, %44, %cst_30 {dimension_numbers = #tpu.dot_dimension_numbers<[1], [0], [0], [1], [0, 0, 1, 1], [], []>} : vector<8x256xbf16>, vector<256x512xbf16>, vector<8x512xf32> -> vector<8x512xf32>
    %46 = arith.addf %41, %45 : vector<8x512xf32>
    %47 = vector.extract_strided_slice %46 {offsets = [0, 0], sizes = [8, 256], strides = [1, 1]} : vector<8x512xf32> to vector<8x256xf32>
    %48 = vector.extract_strided_slice %46 {offsets = [0, 256], sizes = [8, 256], strides = [1, 1]} : vector<8x512xf32> to vector<8x256xf32>
    %49 = arith.maximumf %47, %48 : vector<8x256xf32>
    %50 = vector.extract_strided_slice %49 {offsets = [0, 0], sizes = [8, 128], strides = [1, 1]} : vector<8x256xf32> to vector<8x128xf32>
    %51 = vector.extract_strided_slice %49 {offsets = [0, 128], sizes = [8, 128], strides = [1, 1]} : vector<8x256xf32> to vector<8x128xf32>
    %52 = arith.maximumf %50, %51 : vector<8x128xf32>
    %c0_31 = arith.constant 0 : index
    %c0_32 = arith.constant 0 : index
    %53 = vector.load %arg5[%c0_31, %c0_32] : memref<1x128xf32, #tpu.memory_space<vmem>>, vector<1x128xf32>
    %54 = vector.broadcast %53 : vector<1x128xf32> to vector<8x128xf32>
    %55 = arith.addf %52, %54 : vector<8x128xf32>
    %cst_33 = arith.constant 0.000000e+00 : f32
    %56 = vector.broadcast %cst_33 : f32 to vector<8x128xf32>
    %57 = arith.maximumf %55, %56 : vector<8x128xf32>
    %58 = arith.truncf %57 : vector<8x128xf32> to vector<8x128xbf16>
    %59 = vector.extract_strided_slice %58 {offsets = [0, 0], sizes = [2, 128], strides = [1, 1]} : vector<8x128xbf16> to vector<2x128xbf16>
    %c0_34 = arith.constant 0 : index
    %c0_35 = arith.constant 0 : index
    %c0_36 = arith.constant 0 : index
    %60 = vector.load %arg6[%c0_34, %c0_35, %c0_36] : memref<4x128x128xbf16, #tpu.memory_space<vmem>>, vector<1x128x128xbf16>
    %61 = vector.shape_cast %60 : vector<1x128x128xbf16> to vector<128x128xbf16>
    %cst_37 = arith.constant dense<0.000000e+00> : vector<2x128xf32>
    %62 = tpu.matmul %59, %61, %cst_37 {dimension_numbers = #tpu.dot_dimension_numbers<[1], [0], [0], [1], [0, 0, 1, 1], [], []>} : vector<2x128xbf16>, vector<128x128xbf16>, vector<2x128xf32> -> vector<2x128xf32>
    %63 = vector.extract_strided_slice %58 {offsets = [2, 0], sizes = [2, 128], strides = [1, 1]} : vector<8x128xbf16> to vector<2x128xbf16>
    %c1_38 = arith.constant 1 : index
    %c0_39 = arith.constant 0 : index
    %c0_40 = arith.constant 0 : index
    %64 = vector.load %arg6[%c1_38, %c0_39, %c0_40] : memref<4x128x128xbf16, #tpu.memory_space<vmem>>, vector<1x128x128xbf16>
    %65 = vector.shape_cast %64 : vector<1x128x128xbf16> to vector<128x128xbf16>
    %cst_41 = arith.constant dense<0.000000e+00> : vector<2x128xf32>
    %66 = tpu.matmul %63, %65, %cst_41 {dimension_numbers = #tpu.dot_dimension_numbers<[1], [0], [0], [1], [0, 0, 1, 1], [], []>} : vector<2x128xbf16>, vector<128x128xbf16>, vector<2x128xf32> -> vector<2x128xf32>
    %67 = arith.addf %62, %66 : vector<2x128xf32>
    %68 = vector.extract_strided_slice %58 {offsets = [4, 0], sizes = [2, 128], strides = [1, 1]} : vector<8x128xbf16> to vector<2x128xbf16>
    %c2_42 = arith.constant 2 : index
    %c0_43 = arith.constant 0 : index
    %c0_44 = arith.constant 0 : index
    %69 = vector.load %arg6[%c2_42, %c0_43, %c0_44] : memref<4x128x128xbf16, #tpu.memory_space<vmem>>, vector<1x128x128xbf16>
    %70 = vector.shape_cast %69 : vector<1x128x128xbf16> to vector<128x128xbf16>
    %cst_45 = arith.constant dense<0.000000e+00> : vector<2x128xf32>
    %71 = tpu.matmul %68, %70, %cst_45 {dimension_numbers = #tpu.dot_dimension_numbers<[1], [0], [0], [1], [0, 0, 1, 1], [], []>} : vector<2x128xbf16>, vector<128x128xbf16>, vector<2x128xf32> -> vector<2x128xf32>
    %72 = arith.addf %67, %71 : vector<2x128xf32>
    %73 = vector.extract_strided_slice %58 {offsets = [6, 0], sizes = [2, 128], strides = [1, 1]} : vector<8x128xbf16> to vector<2x128xbf16>
    %c3 = arith.constant 3 : index
    %c0_46 = arith.constant 0 : index
    %c0_47 = arith.constant 0 : index
    %74 = vector.load %arg6[%c3, %c0_46, %c0_47] : memref<4x128x128xbf16, #tpu.memory_space<vmem>>, vector<1x128x128xbf16>
    %75 = vector.shape_cast %74 : vector<1x128x128xbf16> to vector<128x128xbf16>
    %cst_48 = arith.constant dense<0.000000e+00> : vector<2x128xf32>
    %76 = tpu.matmul %73, %75, %cst_48 {dimension_numbers = #tpu.dot_dimension_numbers<[1], [0], [0], [1], [0, 0, 1, 1], [], []>} : vector<2x128xbf16>, vector<128x128xbf16>, vector<2x128xf32> -> vector<2x128xf32>
    %77 = arith.addf %72, %76 : vector<2x128xf32>
    %c0_49 = arith.constant 0 : index
    %c0_50 = arith.constant 0 : index
    %78 = vector.load %arg7[%c0_49, %c0_50] : memref<1x128xf32, #tpu.memory_space<vmem>>, vector<1x128xf32>
    %79 = vector.broadcast %78 : vector<1x128xf32> to vector<2x128xf32>
    %80 = arith.addf %77, %79 : vector<2x128xf32>
    %c0_51 = arith.constant 0 : index
    %c0_52 = arith.constant 0 : index
    %c0_53 = arith.constant 0 : index
    %81 = vector.load %arg8[%c0_51, %c0_52, %c0_53] : memref<1x2x128xf32, #tpu.memory_space<vmem>>, vector<1x2x128xf32>
    %82 = vector.shape_cast %81 : vector<1x2x128xf32> to vector<2x128xf32>
    %83 = vector.shape_cast %80 : vector<2x128xf32> to vector<1x2x128xf32>
    tpu.vector_store %arg8[%c0_51, %c0_52, %c0_53], %83 {strides = array<i32>} : memref<1x2x128xf32, #tpu.memory_space<vmem>>, vector<1x2x128xf32>,
    return
  }
  func.func @transform_0(%arg0: i32) -> (i32, i32, i32) {
    %c0_i32 = arith.constant 0 : i32
    %c0_i32_0 = arith.constant 0 : i32
    %c0_i32_1 = arith.constant 0 : i32
    return %arg0, %c0_i32, %c0_i32_0 : i32, i32, i32
  }
  func.func @transform_1(%arg0: i32) -> (i32, i32) {
    %c0_i32 = arith.constant 0 : i32
    %c0_i32_0 = arith.constant 0 : i32
    %c0_i32_1 = arith.constant 0 : i32
    return %c0_i32, %c0_i32_0 : i32, i32
  }
  func.func @transform_2(%arg0: i32) -> (i32, i32) {
    %c0_i32 = arith.constant 0 : i32
    %c0_i32_0 = arith.constant 0 : i32
    %c0_i32_1 = arith.constant 0 : i32
    return %c0_i32, %c0_i32_0 : i32, i32
  }
  func.func @transform_3(%arg0: i32) -> (i32, i32, i32) {
    %c0_i32 = arith.constant 0 : i32
    %c0_i32_0 = arith.constant 0 : i32
    %c0_i32_1 = arith.constant 0 : i32
    %c0_i32_2 = arith.constant 0 : i32
    return %c0_i32, %c0_i32_0, %c0_i32_1 : i32, i32, i32
  }
  func.func @transform_4(%arg0: i32) -> (i32, i32) {
    %c0_i32 = arith.constant 0 : i32
    %c0_i32_0 = arith.constant 0 : i32
    %c0_i32_1 = arith.constant 0 : i32
    return %c0_i32, %c0_i32_0 : i32, i32
  }
  func.func @transform_5(%arg0: i32) -> (i32, i32, i32) {
    %c0_i32 = arith.constant 0 : i32
    %c0_i32_0 = arith.constant 0 : i32
    %c0_i32_1 = arith.constant 0 : i32
    %c0_i32_2 = arith.constant 0 : i32
    return %c0_i32, %c0_i32_0, %c0_i32_1 : i32, i32, i32
  }
  func.func @transform_6(%arg0: i32) -> (i32, i32) {
    %c0_i32 = arith.constant 0 : i32
    %c0_i32_0 = arith.constant 0 : i32
    %c0_i32_1 = arith.constant 0 : i32
    return %c0_i32, %c0_i32_0 : i32, i32
  }
  func.func @transform_7(%arg0: i32) -> (i32, i32, i32) {
    %c0_i32 = arith.constant 0 : i32
    %c0_i32_0 = arith.constant 0 : i32
    %c0_i32_1 = arith.constant 0 : i32
    return %arg0, %c0_i32, %c0_i32_0 : i32, i32, i32
  }
}

</mosaic_0001>

<llo_original>
// kernel: tile.13
$region0: #{tile.13}
  #allocation0 [shape = 's32[1]{0}', space=sflag, size = 0x4, scoped, tag = 'scoped memory for tile.13']
  %s0 = inlined_call_operand.vmem [shape: f32[16], index: 0, kind: input, shape index: {}]
  %s1 = inlined_call_operand.vmem [shape: f32[8,16], index: 1, kind: output, shape index: {}]
  // Predicated region
  $region2: #{tile.13} parent=0 // pred_check
    _
  $region3: #{tile.13} parent=0 // pred_check_branch
    %3 = sbr.rel (0) target = $region5
  $region4: #{tile.13} parent=0 // pred_region
    _
  $region5: #{tile.13} parent=0 // pred_fallthru
    _
  %v4 = vld [vmem:[%s0] ss:$0 sm:$0xff]
  %5 = vst [vmem:[%s1] sm:$0xff] %v4

// kernel: tile.14
$region0: #{tile.14}
  %s0 = inlined_call_operand.vmem [shape: f32[8,16], index: 0, kind: input, shape index: {}]
  %s1 = inlined_call_operand.vmem [shape: f32[1,128], index: 1, kind: output, shape index: {}]
  $region1: #{tile.14} parent=0
    #allocation0 [shape = 'u8[4096]{0}', space=vmem, size = 0x1000, scoped, tag = 'scoped mem for output reshape']
    %v2 = vld [vmem:[%s0] sm:$0x1]
    %vm3 = vcmask 130048
    %4 = vst.msk [vmem:[#allocation0] sm:$0x1] %vm3, %v2
    %s5 = scalar_lea.vmem %s0, 7
    %v6 = vld [vmem:[%s5] sm:$0x1]
    %7 = vrot.lane.b32.xlu0 %v6, 112
    %v8 = vpop.permute.xlu0 %7
    %vm9 = vcmask 1048448
    %10 = vst.msk [vmem:[#allocation0] sm:$0x1] %vm9, %v8
    %s11 = scalar_lea.vmem %s0, 6
    %v12 = vld [vmem:[%s11] sm:$0x1]
    %13 = vrot.lane.b32.xlu0 %v12, 96
    %v14 = vpop.permute.xlu0 %13
    %vm15 = vcmask 917248
    %16 = vst.msk [vmem:[#allocation0] sm:$0x1] %vm15, %v14
    %s17 = scalar_lea.vmem %s0, 5
    %v18 = vld [vmem:[%s17] sm:$0x1]
    %19 = vrot.lane.b32.xlu0 %v18, 80
    %v20 = vpop.permute.xlu0 %19
    %vm21 = vcmask 786048
    %22 = vst.msk [vmem:[#allocation0] sm:$0x1] %vm21, %v20
    %s23 = scalar_lea.vmem %s0, 4
    %v24 = vld [vmem:[%s23] sm:$0x1]
    %25 = vrot.lane.b32.xlu0 %v24, 64
    %v26 = vpop.permute.xlu0 %25
    %vm27 = vcmask 654848
    %28 = vst.msk [vmem:[#allocation0] sm:$0x1] %vm27, %v26
    %s29 = scalar_lea.vmem %s0, 3
    %v30 = vld [vmem:[%s29] sm:$0x1]
    %31 = vrot.lane.b32.xlu0 %v30, 48
    %v32 = vpop.permute.xlu0 %31
    %vm33 = vcmask 523648
    %34 = vst.msk [vmem:[#allocation0] sm:$0x1] %vm33, %v32
    %s35 = scalar_lea.vmem %s0, 2
    %v36 = vld [vmem:[%s35] sm:$0x1]
    %37 = vrot.lane.b32.xlu0 %v36, 32
    %v38 = vpop.permute.xlu0 %37
    %vm39 = vcmask 392448
    %40 = vst.msk [vmem:[#allocation0] sm:$0x1] %vm39, %v38
    %s41 = scalar_lea.vmem %s0, 1
    %v42 = vld [vmem:[%s41] sm:$0x1]
    %43 = vrot.lane.b32.xlu0 %v42, 16
    %v44 = vpop.permute.xlu0 %43
    %vm45 = vcmask 261248
    %46 = vst.msk [vmem:[#allocation0] sm:$0x1] %vm45, %v44
    %s48 = sshll.u32 1, 1
    %s49 = ssub.s32 %s48, 1
    %v51 = vld [vmem:[#allocation0] sm:%s49]
    %s52 = sshll.u32 1, 1
    %s53 = ssub.s32 %s52, 1
    %54 = vst [vmem:[%s1] sm:%s53] %v51

// kernel: tile.18
$region0: #{tile.18}
  #allocation0 [shape = 's32[1]{0}', space=sflag, size = 0x4, scoped, tag = 'scoped memory for tile.18']
  %s0 = inlined_call_operand.vmem [shape: f32[32], index: 0, kind: input, shape index: {}]
  %s1 = inlined_call_operand.vmem [shape: f32[4,32], index: 1, kind: output, shape index: {}]
  // Predicated region
  $region2: #{tile.18} parent=0 // pred_check
    _
  $region3: #{tile.18} parent=0 // pred_check_branch
    %3 = sbr.rel (0) target = $region5
  $region4: #{tile.18} parent=0 // pred_region
    _
  $region5: #{tile.18} parent=0 // pred_fallthru
    _
  %v4 = vld [vmem:[%s0] ss:$0 sm:$0xff]
  %5 = vst [vmem:[%s1] sm:$0xf] %v4

// kernel: tile.19
$region0: #{tile.19}
  %s0 = inlined_call_operand.vmem [shape: f32[4,32], index: 0, kind: input, shape index: {}]
  %s1 = inlined_call_operand.vmem [shape: f32[1,128], index: 1, kind: output, shape index: {}]
  $region1: #{tile.19} parent=0
    #allocation0 [shape = 'u8[4096]{0}', space=vmem, size = 0x1000, scoped, tag = 'scoped mem for output reshape']
    #allocation1 [shape = 'u8[4096]{0}', space=vmem, size = 0x1000, scoped, tag = 'scoped mem for input reshape']
    %s3 = sshll.u32 1, 4
    %s4 = ssub.s32 %s3, 1
    %v5 = vld [vmem:[%s0] sm:%s4]
    %6 = vst [vmem:[#allocation1] sm:%s4] %v5
    %v7 = vld [vmem:[#allocation1] sm:$0x1]
    %vm8 = vcmask 261120
    %9 = vst.msk [vmem:[#allocation0] sm:$0x1] %vm8, %v7
    %s10 = scalar_lea.vmem [#allocation1], 3
    %v11 = vld [vmem:[%s10] sm:$0x1]
    %12 = vrot.lane.b32.xlu0 %v11, 96
    %v13 = vpop.permute.xlu0 %12
    %vm14 = vcmask 1048320
    %15 = vst.msk [vmem:[#allocation0] sm:$0x1] %vm14, %v13
    %s16 = scalar_lea.vmem [#allocation1], 2
    %v17 = vld [vmem:[%s16] sm:$0x1]
    %18 = vrot.lane.b32.xlu0 %v17, 64
    %v19 = vpop.permute.xlu0 %18
    %vm20 = vcmask 785920
    %21 = vst.msk [vmem:[#allocation0] sm:$0x1] %vm20, %v19
    %s22 = scalar_lea.vmem [#allocation1], 1
    %v23 = vld [vmem:[%s22] sm:$0x1]
    %24 = vrot.lane.b32.xlu0 %v23, 32
    %v25 = vpop.permute.xlu0 %24
    %vm26 = vcmask 523520
    %27 = vst.msk [vmem:[#allocation0] sm:$0x1] %vm26, %v25
    %s29 = sshll.u32 1, 1
    %s30 = ssub.s32 %s29, 1
    %v32 = vld [vmem:[#allocation0] sm:%s30]
    %s33 = sshll.u32 1, 1
    %s34 = ssub.s32 %s33, 1
    %35 = vst [vmem:[%s1] sm:%s34] %v32

// kernel: cnn_forward.1
$region0: #{cnn_forward.1}
  #allocation0 [shape = 'u32[]', space=smem, size = 0x4, offset = 0x4, fixed_abs, tag = 'smem constant byte address 0x4 - core index']
  #allocation1 [shape = 'u32[144,128]{1,0:T(1,128)}', space=vmem, size = 0x12000, scoped, tag = 'internal scratch']
  #allocation2 [shape = 'bf16[12,256]{1,0:T(8,128)(2,1)}', space=vmem, size = 0x2000, scoped, tag = 'scratch operand']
  %s0 = inlined_call_operand.vmem [shape: bf16[1,32,320], index: 0, kind: input, shape index: {}]
  %s1 = inlined_call_operand.vmem [shape: bf16[320,256], index: 1, kind: input, shape index: {}]
  %s2 = inlined_call_operand.vmem [shape: f32[1,128], index: 2, kind: input, shape index: {}]
  %s3 = inlined_call_operand.vmem [shape: bf16[3,256,512], index: 3, kind: input, shape index: {}]
  %s4 = inlined_call_operand.vmem [shape: f32[1,128], index: 4, kind: input, shape index: {}]
  %s5 = inlined_call_operand.vmem [shape: bf16[4,128,128], index: 5, kind: input, shape index: {}]
  %s6 = inlined_call_operand.vmem [shape: f32[1,128], index: 6, kind: input, shape index: {}]
  %s7 = inlined_call_operand.hbm [shape: f32[1,2,128], index: 7, kind: output, shape index: {}]
  %s8 = sld [smem:[#allocation0]]
  $region38: #{cnn_forward.1} parent=0
    _
  %s10 = ssub.s32 1, %s8
  %s11 = scalar_select 0, %s10, %s8
  $region1: #{cnn_forward.1} parent=0
    #allocation3 [shape = 'u8[1024]{0}', space=vmem, size = 0x400, scoped, tag = 'output window, operand 0, single buffered']
    #allocation4 [shape = 's32[1]{0}', space=sflag, size = 0x4, scoped, tag = 'scoped memory for cnn_forward.1']
    %12 = vsyncpa [#allocation4], 0
    // Predicated region
    $region2: #{cnn_forward.1} parent=1 // pred_check
      _
    $region3: #{cnn_forward.1} parent=1 // pred_check_branch
      %14 = sbr.rel (0) target = $region5
    $region4: #{cnn_forward.1} parent=1 // pred_region
      _
    $region5: #{cnn_forward.1} parent=1 // pred_fallthru
      _
    // Predicated region
    $region6: #{cnn_forward.1} parent=1 // pred_check
      _
    $region7: #{cnn_forward.1} parent=1 // pred_check_branch
      %16 = sbr.rel (0) target = $region9
    $region8: #{cnn_forward.1} parent=1 // pred_region
      _
    $region9: #{cnn_forward.1} parent=1 // pred_fallthru
      _
    // Predicated region
    $region10: #{cnn_forward.1} parent=1 // pred_check
      _
    $region11: #{cnn_forward.1} parent=1 // pred_check_branch
      %18 = sbr.rel (0) target = $region13
    $region12: #{cnn_forward.1} parent=1 // pred_region
      _
    $region13: #{cnn_forward.1} parent=1 // pred_fallthru
      _
    // Predicated region
    $region14: #{cnn_forward.1} parent=1 // pred_check
      _
    $region15: #{cnn_forward.1} parent=1 // pred_check_branch
      %20 = sbr.rel (0) target = $region17
    $region16: #{cnn_forward.1} parent=1 // pred_region
      _
    $region17: #{cnn_forward.1} parent=1 // pred_fallthru
      _
    // Predicated region
    $region18: #{cnn_forward.1} parent=1 // pred_check
      _
    $region19: #{cnn_forward.1} parent=1 // pred_check_branch
      %22 = sbr.rel (0) target = $region21
    $region20: #{cnn_forward.1} parent=1 // pred_region
      _
    $region21: #{cnn_forward.1} parent=1 // pred_fallthru
      _
    // Predicated region
    $region22: #{cnn_forward.1} parent=1 // pred_check
      _
    $region23: #{cnn_forward.1} parent=1 // pred_check_branch
      %24 = sbr.rel (0) target = $region25
    $region24: #{cnn_forward.1} parent=1 // pred_region
      _
    $region25: #{cnn_forward.1} parent=1 // pred_fallthru
      _
    // Predicated region
    $region26: #{cnn_forward.1} parent=1 // pred_check
      _
    $region27: #{cnn_forward.1} parent=1 // pred_check_branch
      %26 = sbr.rel (0) target = $region29
    $region28: #{cnn_forward.1} parent=1 // pred_region
      _
    $region29: #{cnn_forward.1} parent=1 // pred_fallthru
      _
    %v28 = vld [vmem:[%s0] sm:$0xff]
    %v29 = vld [vmem:[%s0 + $0x8] sm:$0xf]
    %v30 = vld [vmem:[%s0 + $0xc] sm:$0xff]
    %v31 = vld [vmem:[%s0 + $0x14] sm:$0xf]
    %v32 = vld [vmem:[%s0 + $0x18] sm:$0xff]
    %v33 = vld [vmem:[%s0 + $0x20] sm:$0xf]
    %v34 = vld [vmem:[%s0 + $0x24] sm:$0xff]
    %v35 = vld [vmem:[%s0 + $0x2c] sm:$0xf]
    %v36 = vld [vmem:[%s1] sm:$0xff]
    %v37 = vld [vmem:[%s1 + $0x8] sm:$0xff]
    %v38 = vld [vmem:[%s1 + $0x10] sm:$0xff]
    %v39 = vld [vmem:[%s1 + $0x18] sm:$0xff]
    %v40 = vld [vmem:[%s1 + $0x20] sm:$0xff]
    %v41 = vld [vmem:[%s1 + $0x28] sm:$0xff]
    %v42 = vld [vmem:[%s1 + $0x30] sm:$0xff]
    %v43 = vld [vmem:[%s1 + $0x38] sm:$0xff]
    %v44 = vld [vmem:[%s1 + $0x40] sm:$0xff]
    %v45 = vld [vmem:[%s1 + $0x48] sm:$0xff]
    %v46 = vld [vmem:[%s1 + $0x50] sm:$0xff]
    %v47 = vld [vmem:[%s1 + $0x58] sm:$0xff]
    %v48 = vld [vmem:[%s1 + $0x60] sm:$0xff]
    %v49 = vld [vmem:[%s1 + $0x68] sm:$0xff]
    %v50 = vld [vmem:[%s1 + $0x70] sm:$0xff]
    %v51 = vld [vmem:[%s1 + $0x78] sm:$0xff]
    %v52 = vld [vmem:[%s1 + $0x80] sm:$0xff]
    %v53 = vld [vmem:[%s1 + $0x88] sm:$0xff]
    %v54 = vld [vmem:[%s1 + $0x90] sm:$0xff]
    %v55 = vld [vmem:[%s1 + $0x98] sm:$0xff]
    %v56 = vld [vmem:[%s1 + $0xa0] sm:$0xff]
    %v57 = vld [vmem:[%s1 + $0xa8] sm:$0xff]
    %v58 = vld [vmem:[%s1 + $0xb0] sm:$0xff]
    %v59 = vld [vmem:[%s1 + $0xb8] sm:$0xff]
    %v60 = vld [vmem:[%s1 + $0xc0] sm:$0xff]
    %v61 = vld [vmem:[%s1 + $0xc8] sm:$0xff]
    %v62 = vld [vmem:[%s1 + $0xd0] sm:$0xff]
    %v63 = vld [vmem:[%s1 + $0xd8] sm:$0xff]
    %v64 = vld [vmem:[%s1 + $0xe0] sm:$0xff]
    %v65 = vld [vmem:[%s1 + $0xe8] sm:$0xff]
    %v66 = vld [vmem:[%s1 + $0xf0] sm:$0xff]
    %v67 = vld [vmem:[%s1 + $0xf8] sm:$0xff]
    %v68 = vld [vmem:[%s1 + $0x100] sm:$0xff]
    %v69 = vld [vmem:[%s1 + $0x108] sm:$0xff]
    %v70 = vld [vmem:[%s1 + $0x110] sm:$0xff]
    %v71 = vld [vmem:[%s1 + $0x118] sm:$0xff]
    %v72 = vld [vmem:[%s1 + $0x120] sm:$0xff]
    %v73 = vld [vmem:[%s1 + $0x128] sm:$0xff]
    %v74 = vld [vmem:[%s1 + $0x130] sm:$0xff]
    %v75 = vld [vmem:[%s1 + $0x138] sm:$0xff]
    %v84 = vunpack.c.l.b16 %v28
    %v85 = vunpack.c.h.b16 %v28
    %v86 = vunpack.c.l.b16 %v29
    %v87 = vunpack.c.l.b16 %v30
    %v88 = vunpack.c.h.b16 %v30
    %v89 = vunpack.c.l.b16 %v31
    %v90 = vunpack.c.l.b16 %v32
    %v91 = vunpack.c.h.b16 %v32
    %v92 = vunpack.c.l.b16 %v33
    %v93 = vunpack.c.l.b16 %v34
    %v94 = vunpack.c.h.b16 %v34
    %v95 = vunpack.c.l.b16 %v35
    %v96 = vpack.c.b16 %v87, %v84
    %v97 = vpack.c.b16 %v88, %v85
    %v98 = vpack.c.b16 %v89, %v86
    %v99 = vpack.c.b16 %v93, %v90
    %v100 = vpack.c.b16 %v94, %v91
    %v101 = vpack.c.b16 %v95, %v92
    %v146 = vunpack.c.l.b16 %v36
    %v147 = vunpack.c.h.b16 %v36
    %v148 = vunpack.c.l.b16 %v37
    %v149 = vunpack.c.h.b16 %v37
    %v150 = vunpack.c.l.b16 %v38
    %v151 = vunpack.c.h.b16 %v38
    %v152 = vunpack.c.l.b16 %v39
    %v153 = vunpack.c.h.b16 %v39
    %v154 = vunpack.c.l.b16 %v40
    %v155 = vunpack.c.h.b16 %v40
    %v156 = vunpack.c.l.b16 %v41
    %v157 = vunpack.c.h.b16 %v41
    %v158 = vunpack.c.l.b16 %v42
    %v159 = vunpack.c.h.b16 %v42
    %v160 = vunpack.c.l.b16 %v43
    %v161 = vunpack.c.h.b16 %v43
    %v162 = vunpack.c.l.b16 %v44
    %v163 = vunpack.c.h.b16 %v44
    %v164 = vunpack.c.l.b16 %v45
    %v165 = vunpack.c.h.b16 %v45
    %v166 = vunpack.c.l.b16 %v46
    %v167 = vunpack.c.h.b16 %v46
    %v168 = vunpack.c.l.b16 %v47
    %v169 = vunpack.c.h.b16 %v47
    %v170 = vunpack.c.l.b16 %v48
    %v171 = vunpack.c.h.b16 %v48
    %v172 = vunpack.c.l.b16 %v49
    %v173 = vunpack.c.h.b16 %v49
    %v174 = vunpack.c.l.b16 %v50
    %v175 = vunpack.c.h.b16 %v50
    %v176 = vunpack.c.l.b16 %v51
    %v177 = vunpack.c.h.b16 %v51
    %v178 = vunpack.c.l.b16 %v52
    %v179 = vunpack.c.h.b16 %v52
    %v180 = vunpack.c.l.b16 %v53
    %v181 = vunpack.c.h.b16 %v53
    %v182 = vunpack.c.l.b16 %v54
    %v183 = vunpack.c.h.b16 %v54
    %v184 = vunpack.c.l.b16 %v55
    %v185 = vunpack.c.h.b16 %v55
    %v186 = vunpack.c.l.b16 %v56
    %v187 = vunpack.c.h.b16 %v56
    %v188 = vunpack.c.l.b16 %v57
    %v189 = vunpack.c.h.b16 %v57
    %v190 = vunpack.c.l.b16 %v58
    %v191 = vunpack.c.h.b16 %v58
    %v192 = vunpack.c.l.b16 %v59
    %v193 = vunpack.c.h.b16 %v59
    %v194 = vunpack.c.l.b16 %v60
    %v195 = vunpack.c.h.b16 %v60
    %v196 = vunpack.c.l.b16 %v61
    %v197 = vunpack.c.h.b16 %v61
    %v198 = vunpack.c.l.b16 %v62
    %v199 = vunpack.c.h.b16 %v62
    %v200 = vunpack.c.l.b16 %v63
    %v201 = vunpack.c.h.b16 %v63
    %v202 = vunpack.c.l.b16 %v64
    %v203 = vunpack.c.h.b16 %v64
    %v204 = vunpack.c.l.b16 %v65
    %v205 = vunpack.c.h.b16 %v65
    %v206 = vunpack.c.l.b16 %v66
    %v207 = vunpack.c.h.b16 %v66
    %v208 = vunpack.c.l.b16 %v67
    %v209 = vunpack.c.h.b16 %v67
    %v210 = vunpack.c.l.b16 %v68
    %v211 = vunpack.c.h.b16 %v68
    %v212 = vunpack.c.l.b16 %v69
    %v213 = vunpack.c.h.b16 %v69
    %v214 = vunpack.c.l.b16 %v70
    %v215 = vunpack.c.h.b16 %v70
    %v216 = vunpack.c.l.b16 %v71
    %v217 = vunpack.c.h.b16 %v71
    %v218 = vunpack.c.l.b16 %v72
    %v219 = vunpack.c.h.b16 %v72
    %v220 = vunpack.c.l.b16 %v73
    %v221 = vunpack.c.h.b16 %v73
    %v222 = vunpack.c.l.b16 %v74
    %v223 = vunpack.c.h.b16 %v74
    %v224 = vunpack.c.l.b16 %v75
    %v225 = vunpack.c.h.b16 %v75
    %v226 = vpack.c.b16 %v148, %v146
    %v227 = vpack.c.b16 %v149, %v147
    %v228 = vpack.c.b16 %v152, %v150
    %v229 = vpack.c.b16 %v153, %v151
    %v230 = vpack.c.b16 %v156, %v154
    %v231 = vpack.c.b16 %v157, %v155
    %v232 = vpack.c.b16 %v160, %v158
    %v233 = vpack.c.b16 %v161, %v159
    %v234 = vpack.c.b16 %v164, %v162
    %v235 = vpack.c.b16 %v165, %v163
    %v236 = vpack.c.b16 %v168, %v166
    %v237 = vpack.c.b16 %v169, %v167
    %v238 = vpack.c.b16 %v172, %v170
    %v239 = vpack.c.b16 %v173, %v171
    %v240 = vpack.c.b16 %v176, %v174
    %v241 = vpack.c.b16 %v177, %v175
    %v242 = vpack.c.b16 %v180, %v178
    %v243 = vpack.c.b16 %v181, %v179
    %v244 = vpack.c.b16 %v184, %v182
    %v245 = vpack.c.b16 %v185, %v183
    %v246 = vpack.c.b16 %v188, %v186
    %v247 = vpack.c.b16 %v189, %v187
    %v248 = vpack.c.b16 %v192, %v190
    %v249 = vpack.c.b16 %v193, %v191
    %v250 = vpack.c.b16 %v196, %v194
    %v251 = vpack.c.b16 %v197, %v195
    %v252 = vpack.c.b16 %v200, %v198
    %v253 = vpack.c.b16 %v201, %v199
    %v254 = vpack.c.b16 %v204, %v202
    %v255 = vpack.c.b16 %v205, %v203
    %v256 = vpack.c.b16 %v208, %v206
    %v257 = vpack.c.b16 %v209, %v207
    %v258 = vpack.c.b16 %v212, %v210
    %v259 = vpack.c.b16 %v213, %v211
    %v260 = vpack.c.b16 %v216, %v214
    %v261 = vpack.c.b16 %v217, %v215
    %v262 = vpack.c.b16 %v220, %v218
    %v263 = vpack.c.b16 %v221, %v219
    %v264 = vpack.c.b16 %v224, %v222
    %v265 = vpack.c.b16 %v225, %v223
    %vm306 = vcmask 523264
    %v308 = vsel %vm306, %v98, 0
    %v311 = vsel %vm306, %v101, 0
    %313 = vmatprep.subr.bf16.mxu0 %v241
    %314 = vmatpush1.bf16.msra.mxu0 %v240
    %315 = vmatprep.subr.bf16.mxu0 %v239
    %316 = vmatpush1.bf16.msra.mxu0 %v238
    %317 = vmatprep.subr.bf16.mxu0 %v237
    %318 = vmatpush1.bf16.msra.mxu0 %v236
    %319 = vmatprep.subr.bf16.mxu0 %v235
    %320 = vmatpush1.bf16.msra.mxu0 %v234
    %321 = vmatprep.subr.bf16.mxu0 %v233
    %322 = vmatpush1.bf16.msra.mxu0 %v232
    %323 = vmatprep.subr.bf16.mxu0 %v231
    %324 = vmatpush1.bf16.msra.mxu0 %v230
    %325 = vmatprep.subr.bf16.mxu0 %v229
    %326 = vmatpush1.bf16.msra.mxu0 %v228
    %327 = vmatprep.subr.bf16.mxu0 %v227
    %328 = vmatpush1.bf16.msra.mxu0 %v226
    %329 = vmatprep.subr.bf16.mxu0 %v257
    %330 = vmatpush2.bf16.msra.mxu0 %v256
    %331 = vmatprep.subr.bf16.mxu0 %v255
    %332 = vmatpush2.bf16.msra.mxu0 %v254
    %333 = vmatprep.subr.bf16.mxu0 %v253
    %334 = vmatpush2.bf16.msra.mxu0 %v252
    %335 = vmatprep.subr.bf16.mxu0 %v251
    %336 = vmatpush2.bf16.msra.mxu0 %v250
    %337 = vmatprep.subr.bf16.mxu0 %v249
    %338 = vmatpush2.bf16.msra.mxu0 %v248
    %339 = vmatprep.subr.bf16.mxu0 %v247
    %340 = vmatpush2.bf16.msra.mxu0 %v246
    %341 = vmatprep.subr.bf16.mxu0 %v245
    %342 = vmatpush2.bf16.msra.mxu0 %v244
    %343 = vmatprep.subr.bf16.mxu0 %v243
    %344 = vmatpush2.bf16.msra.mxu0 %v242
    %345 = vmatprep.mubr.bf16.mxu0 %v97
    %346 = vmatmul.mubr.bf16.gmra.mxu0 %v96
    %v347 = vpop.f32.mrf.mxu0
    %v348 = vadd.f32 0.0, %v347
    %v349 = vpop.f32.mrf.mxu0
    %v350 = vadd.f32 0.0, %v349
    %v351 = vpop.f32.mrf.mxu0
    %v352 = vadd.f32 0.0, %v351
    %v353 = vpop.f32.mrf.mxu0
    %v354 = vadd.f32 0.0, %v353
    %355 = vmatprep.mubr.bf16.mxu0 %v100
    %356 = vmatmul.mubr.bf16.gmra.mxu0 %v99
    %v357 = vpop.f32.mrf.mxu0
    %v358 = vadd.f32 0.0, %v357
    %v359 = vpop.f32.mrf.mxu0
    %v360 = vadd.f32 0.0, %v359
    %v361 = vpop.f32.mrf.mxu0
    %v362 = vadd.f32 0.0, %v361
    %v363 = vpop.f32.mrf.mxu0
    %v364 = vadd.f32 0.0, %v363
    %365 = vdwg.mxu0
    %366 = vmatprep.subr.bf16.mxu0 0
    %367 = vmatpush1.bf16.msra.mxu0 0
    %368 = vmatprep.subr.bf16.mxu0 0
    %369 = vmatpush1.bf16.msra.mxu0 0
    %370 = vmatprep.subr.bf16.mxu0 0
    %371 = vmatpush1.bf16.msra.mxu0 0
    %372 = vmatprep.subr.bf16.mxu0 0
    %373 = vmatpush1.bf16.msra.mxu0 0
    %374 = vmatprep.subr.bf16.mxu0 %v265
    %375 = vmatpush1.bf16.msra.mxu0 %v264
    %376 = vmatprep.subr.bf16.mxu0 %v263
    %377 = vmatpush1.bf16.msra.mxu0 %v262
    %378 = vmatprep.subr.bf16.mxu0 %v261
    %379 = vmatpush1.bf16.msra.mxu0 %v260
    %380 = vmatprep.subr.bf16.mxu0 %v259
    %381 = vmatpush1.bf16.msra.mxu0 %v258
    %382 = vmatprep.subr.bf16.mxu0 0
    %383 = vmatpush2.bf16.msra.mxu0 0
    %384 = vmatprep.subr.bf16.mxu0 0
    %385 = vmatpush2.bf16.msra.mxu0 0
    %386 = vmatprep.subr.bf16.mxu0 0
    %387 = vmatpush2.bf16.msra.mxu0 0
    %388 = vmatprep.subr.bf16.mxu0 0
    %389 = vmatpush2.bf16.msra.mxu0 0
    %390 = vmatprep.subr.bf16.mxu0 0
    %391 = vmatpush2.bf16.msra.mxu0 0
    %392 = vmatprep.subr.bf16.mxu0 0
    %393 = vmatpush2.bf16.msra.mxu0 0
    %394 = vmatprep.subr.bf16.mxu0 0
    %395 = vmatpush2.bf16.msra.mxu0 0
    %396 = vmatprep.subr.bf16.mxu0 0
    %397 = vmatpush2.bf16.msra.mxu0 0
    %398 = vmatprep.mubr.bf16.mxu0 0
    %399 = vmatmul.mubr.bf16.gmra.mxu0 %v308
    %v400 = vpop.f32.mrf.mxu0
    %v401 = vadd.f32 %v348, %v400
    %v402 = vpop.f32.mrf.mxu0
    %v403 = vadd.f32 %v350, %v402
    %v404 = vpop.f32.mrf.mxu0
    %v405 = vadd.f32 %v352, %v404
    %v406 = vpop.f32.mrf.mxu0
    %v407 = vadd.f32 %v354, %v406
    %408 = vmatprep.mubr.bf16.mxu0 0
    %409 = vmatmul.mubr.bf16.gmra.mxu0 %v311
    %v410 = vpop.f32.mrf.mxu0
    %v411 = vadd.f32 %v358, %v410
    %v412 = vpop.f32.mrf.mxu0
    %v413 = vadd.f32 %v360, %v412
    %v414 = vpop.f32.mrf.mxu0
    %v415 = vadd.f32 %v362, %v414
    %v416 = vpop.f32.mrf.mxu0
    %v417 = vadd.f32 %v364, %v416
    %418 = vdwg.mxu0
    %v419 = vmax.f32 %v401, %v405
    %v420 = vmax.f32 %v403, %v407
    %v421 = vmax.f32 %v411, %v415
    %v422 = vmax.f32 %v413, %v417
    %v423 = vmax.f32 %v419, %v420
    %v424 = vld [vmem:[%s2] sm:$0x1]
    %v426 = vlaneseq
    %v427 = vshrl.u32 %v426, 7
    %v428 = vsub.s32 0, %v427
    %v429 = vrot.slane %v424, %v428
    %v431 = vadd.f32 %v423, %v429
    %v432 = vmax.f32 %v431, 0.0
    %v433 = vpack.c.bf16 %v432, %v432
    %v434 = vmax.f32 %v421, %v422
    %v435 = vadd.f32 %v434, %v429
    %v436 = vmax.f32 %v435, 0.0
    %v437 = vpack.c.bf16 %v436, %v436
    %438 = vst [vmem:[#allocation2] sm:$0x11] 0
    %439 = vst [vmem:[#allocation2 + $0x8] sm:$0x22] 0
    %v442 = vunpack.c.l.b16 %v433
    %v443 = vunpack.c.l.b16 %v437
    %v444 = vpack.c.b16 %v443, %v442
    %v445 = vrot.slane %v444, 7
    %v446 = vrot.slane %v445, 4
    %449 = vst [vmem:[#allocation2] sm:$0xee] %v445
    %450 = vst [vmem:[#allocation2 + $0x8] sm:$0x11] %v446
    %v451 = vld [vmem:[#allocation2] sm:$0xff]
    %v452 = vld [vmem:[%s3] sm:$0xff]
    %v453 = vld [vmem:[%s3 + $0x8] sm:$0xff]
    %v454 = vld [vmem:[%s3 + $0x10] sm:$0xff]
    %v455 = vld [vmem:[%s3 + $0x18] sm:$0xff]
    %v456 = vld [vmem:[%s3 + $0x20] sm:$0xff]
    %v457 = vld [vmem:[%s3 + $0x28] sm:$0xff]
    %v458 = vld [vmem:[%s3 + $0x30] sm:$0xff]
    %v459 = vld [vmem:[%s3 + $0x38] sm:$0xff]
    %v460 = vld [vmem:[%s3 + $0x40] sm:$0xff]
    %v461 = vld [vmem:[%s3 + $0x48] sm:$0xff]
    %v462 = vld [vmem:[%s3 + $0x50] sm:$0xff]
    %v463 = vld [vmem:[%s3 + $0x58] sm:$0xff]
    %v464 = vld [vmem:[%s3 + $0x60] sm:$0xff]
    %v465 = vld [vmem:[%s3 + $0x68] sm:$0xff]
    %v466 = vld [vmem:[%s3 + $0x70] sm:$0xff]
    %v467 = vld [vmem:[%s3 + $0x78] sm:$0xff]
    %v468 = vld [vmem:[%s3 + $0x80] sm:$0xff]
    %v469 = vld [vmem:[%s3 + $0x88] sm:$0xff]
    %v470 = vld [vmem:[%s3 + $0x90] sm:$0xff]
    %v471 = vld [vmem:[%s3 + $0x98] sm:$0xff]
    %v472 = vld [vmem:[%s3 + $0xa0] sm:$0xff]
    %v473 = vld [vmem:[%s3 + $0xa8] sm:$0xff]
    %v474 = vld [vmem:[%s3 + $0xb0] sm:$0xff]
    %v475 = vld [vmem:[%s3 + $0xb8] sm:$0xff]
    %v476 = vld [vmem:[%s3 + $0xc0] sm:$0xff]
    %v477 = vld [vmem:[%s3 + $0xc8] sm:$0xff]
    %v478 = vld [vmem:[%s3 + $0xd0] sm:$0xff]
    %v479 = vld [vmem:[%s3 + $0xd8] sm:$0xff]
    %v480 = vld [vmem:[%s3 + $0xe0] sm:$0xff]
    %v481 = vld [vmem:[%s3 + $0xe8] sm:$0xff]
    %v482 = vld [vmem:[%s3 + $0xf0] sm:$0xff]
    %v483 = vld [vmem:[%s3 + $0xf8] sm:$0xff]
    %v484 = vld [vmem:[%s3 + $0x100] sm:$0xff]
    %v485 = vld [vmem:[%s3 + $0x108] sm:$0xff]
    %v486 = vld [vmem:[%s3 + $0x110] sm:$0xff]
    %v487 = vld [vmem:[%s3 + $0x118] sm:$0xff]
    %v488 = vld [vmem:[%s3 + $0x120] sm:$0xff]
    %v489 = vld [vmem:[%s3 + $0x128] sm:$0xff]
    %v490 = vld [vmem:[%s3 + $0x130] sm:$0xff]
    %v491 = vld [vmem:[%s3 + $0x138] sm:$0xff]
    %v492 = vld [vmem:[%s3 + $0x140] sm:$0xff]
    %v493 = vld [vmem:[%s3 + $0x148] sm:$0xff]
    %v494 = vld [vmem:[%s3 + $0x150] sm:$0xff]
    %v495 = vld [vmem:[%s3 + $0x158] sm:$0xff]
    %v496 = vld [vmem:[%s3 + $0x160] sm:$0xff]
    %v497 = vld [vmem:[%s3 + $0x168] sm:$0xff]
    %v498 = vld [vmem:[%s3 + $0x170] sm:$0xff]
    %v499 = vld [vmem:[%s3 + $0x178] sm:$0xff]
    %v500 = vld [vmem:[%s3 + $0x180] sm:$0xff]
    %v501 = vld [vmem:[%s3 + $0x188] sm:$0xff]
    %v502 = vld [vmem:[%s3 + $0x190] sm:$0xff]
    %v503 = vld [vmem:[%s3 + $0x198] sm:$0xff]
    %v504 = vld [vmem:[%s3 + $0x1a0] sm:$0xff]
    %v505 = vld [vmem:[%s3 + $0x1a8] sm:$0xff]
    %v506 = vld [vmem:[%s3 + $0x1b0] sm:$0xff]
    %v507 = vld [vmem:[%s3 + $0x1b8] sm:$0xff]
    %v508 = vld [vmem:[%s3 + $0x1c0] sm:$0xff]
    %v509 = vld [vmem:[%s3 + $0x1c8] sm:$0xff]
    %v510 = vld [vmem:[%s3 + $0x1d0] sm:$0xff]
    %v511 = vld [vmem:[%s3 + $0x1d8] sm:$0xff]
    %v512 = vld [vmem:[%s3 + $0x1e0] sm:$0xff]
    %v513 = vld [vmem:[%s3 + $0x1e8] sm:$0xff]
    %v514 = vld [vmem:[%s3 + $0x1f0] sm:$0xff]
    %v515 = vld [vmem:[%s3 + $0x1f8] sm:$0xff]
    %v516 = vld [vmem:[#allocation2] sm:$0xee]
    %v517 = vld [vmem:[#allocation2 + $0x8] sm:$0x11]
    %s518 = scalar_lea.vmem %s3, 512
    %v519 = vld [vmem:[%s518] sm:$0xff]
    %v520 = vld [vmem:[%s518 + $0x8] sm:$0xff]
    %v521 = vld [vmem:[%s518 + $0x10] sm:$0xff]
    %v522 = vld [vmem:[%s518 + $0x18] sm:$0xff]
    %v523 = vld [vmem:[%s518 + $0x20] sm:$0xff]
    %v524 = vld [vmem:[%s518 + $0x28] sm:$0xff]
    %v525 = vld [vmem:[%s518 + $0x30] sm:$0xff]
    %v526 = vld [vmem:[%s518 + $0x38] sm:$0xff]
    %v527 = vld [vmem:[%s518 + $0x40] sm:$0xff]
    %v528 = vld [vmem:[%s518 + $0x48] sm:$0xff]
    %v529 = vld [vmem:[%s518 + $0x50] sm:$0xff]
    %v530 = vld [vmem:[%s518 + $0x58] sm:$0xff]
    %v531 = vld [vmem:[%s518 + $0x60] sm:$0xff]
    %v532 = vld [vmem:[%s518 + $0x68] sm:$0xff]
    %v533 = vld [vmem:[%s518 + $0x70] sm:$0xff]
    %v534 = vld [vmem:[%s518 + $0x78] sm:$0xff]
    %v535 = vld [vmem:[%s518 + $0x80] sm:$0xff]
    %v536 = vld [vmem:[%s518 + $0x88] sm:$0xff]
    %v537 = vld [vmem:[%s518 + $0x90] sm:$0xff]
    %v538 = vld [vmem:[%s518 + $0x98] sm:$0xff]
    %v539 = vld [vmem:[%s518 + $0xa0] sm:$0xff]
    %v540 = vld [vmem:[%s518 + $0xa8] sm:$0xff]
    %v541 = vld [vmem:[%s518 + $0xb0] sm:$0xff]
    %v542 = vld [vmem:[%s518 + $0xb8] sm:$0xff]
    %v543 = vld [vmem:[%s518 + $0xc0] sm:$0xff]
    %v544 = vld [vmem:[%s518 + $0xc8] sm:$0xff]
    %v545 = vld [vmem:[%s518 + $0xd0] sm:$0xff]
    %v546 = vld [vmem:[%s518 + $0xd8] sm:$0xff]
    %v547 = vld [vmem:[%s518 + $0xe0] sm:$0xff]
    %v548 = vld [vmem:[%s518 + $0xe8] sm:$0xff]
    %v549 = vld [vmem:[%s518 + $0xf0] sm:$0xff]
    %v550 = vld [vmem:[%s518 + $0xf8] sm:$0xff]
    %v551 = vld [vmem:[%s518 + $0x100] sm:$0xff]
    %v552 = vld [vmem:[%s518 + $0x108] sm:$0xff]
    %v553 = vld [vmem:[%s518 + $0x110] sm:$0xff]
    %v554 = vld [vmem:[%s518 + $0x118] sm:$0xff]
    %v555 = vld [vmem:[%s518 + $0x120] sm:$0xff]
    %v556 = vld [vmem:[%s518 + $0x128] sm:$0xff]
    %v557 = vld [vmem:[%s518 + $0x130] sm:$0xff]
    %v558 = vld [vmem:[%s518 + $0x138] sm:$0xff]
    %v559 = vld [vmem:[%s518 + $0x140] sm:$0xff]
    %v560 = vld [vmem:[%s518 + $0x148] sm:$0xff]
    %v561 = vld [vmem:[%s518 + $0x150] sm:$0xff]
    %v562 = vld [vmem:[%s518 + $0x158] sm:$0xff]
    %v563 = vld [vmem:[%s518 + $0x160] sm:$0xff]
    %v564 = vld [vmem:[%s518 + $0x168] sm:$0xff]
    %v565 = vld [vmem:[%s518 + $0x170] sm:$0xff]
    %v566 = vld [vmem:[%s518 + $0x178] sm:$0xff]
    %v567 = vld [vmem:[%s518 + $0x180] sm:$0xff]
    %v568 = vld [vmem:[%s518 + $0x188] sm:$0xff]
    %v569 = vld [vmem:[%s518 + $0x190] sm:$0xff]
    %v570 = vld [vmem:[%s518 + $0x198] sm:$0xff]
    %v571 = vld [vmem:[%s518 + $0x1a0] sm:$0xff]
    %v572 = vld [vmem:[%s518 + $0x1a8] sm:$0xff]
    %v573 = vld [vmem:[%s518 + $0x1b0] sm:$0xff]
    %v574 = vld [vmem:[%s518 + $0x1b8] sm:$0xff]
    %v575 = vld [vmem:[%s518 + $0x1c0] sm:$0xff]
    %v576 = vld [vmem:[%s518 + $0x1c8] sm:$0xff]
    %v577 = vld [vmem:[%s518 + $0x1d0] sm:$0xff]
    %v578 = vld [vmem:[%s518 + $0x1d8] sm:$0xff]
    %v579 = vld [vmem:[%s518 + $0x1e0] sm:$0xff]
    %v580 = vld [vmem:[%s518 + $0x1e8] sm:$0xff]
    %v581 = vld [vmem:[%s518 + $0x1f0] sm:$0xff]
    %v582 = vld [vmem:[%s518 + $0x1f8] sm:$0xff]
    %v585 = vunpack.c.l.b16 %v516
    %v586 = vunpack.c.h.b16 %v516
    %v587 = vunpack.c.l.b16 %v517
    %v588 = vunpack.c.h.b16 %v517
    %v589 = vpack.c.b16 %v587, %v585
    %v590 = vpack.c.b16 %v588, %v586
    %v591 = vrot.slane %v589, 1
    %v592 = vrot.slane %v590, 1
    %v659 = vunpack.c.l.b16 %v519
    %v660 = vunpack.c.h.b16 %v519
    %v661 = vunpack.c.l.b16 %v520
    %v662 = vunpack.c.h.b16 %v520
    %v663 = vunpack.c.l.b16 %v521
    %v664 = vunpack.c.h.b16 %v521
    %v665 = vunpack.c.l.b16 %v522
    %v666 = vunpack.c.h.b16 %v522
    %v667 = vunpack.c.l.b16 %v523
    %v668 = vunpack.c.h.b16 %v523
    %v669 = vunpack.c.l.b16 %v524
    %v670 = vunpack.c.h.b16 %v524
    %v671 = vunpack.c.l.b16 %v525
    %v672 = vunpack.c.h.b16 %v525
    %v673 = vunpack.c.l.b16 %v526
    %v674 = vunpack.c.h.b16 %v526
    %v675 = vunpack.c.l.b16 %v527
    %v676 = vunpack.c.h.b16 %v527
    %v677 = vunpack.c.l.b16 %v528
    %v678 = vunpack.c.h.b16 %v528
    %v679 = vunpack.c.l.b16 %v529
    %v680 = vunpack.c.h.b16 %v529
    %v681 = vunpack.c.l.b16 %v530
    %v682 = vunpack.c.h.b16 %v530
    %v683 = vunpack.c.l.b16 %v531
    %v684 = vunpack.c.h.b16 %v531
    %v685 = vunpack.c.l.b16 %v532
    %v686 = vunpack.c.h.b16 %v532
    %v687 = vunpack.c.l.b16 %v533
    %v688 = vunpack.c.h.b16 %v533
    %v689 = vunpack.c.l.b16 %v534
    %v690 = vunpack.c.h.b16 %v534
    %v691 = vunpack.c.l.b16 %v535
    %v692 = vunpack.c.h.b16 %v535
    %v693 = vunpack.c.l.b16 %v536
    %v694 = vunpack.c.h.b16 %v536
    %v695 = vunpack.c.l.b16 %v537
    %v696 = vunpack.c.h.b16 %v537
    %v697 = vunpack.c.l.b16 %v538
    %v698 = vunpack.c.h.b16 %v538
    %v699 = vunpack.c.l.b16 %v539
    %v700 = vunpack.c.h.b16 %v539
    %v701 = vunpack.c.l.b16 %v540
    %v702 = vunpack.c.h.b16 %v540
    %v703 = vunpack.c.l.b16 %v541
    %v704 = vunpack.c.h.b16 %v541
    %v705 = vunpack.c.l.b16 %v542
    %v706 = vunpack.c.h.b16 %v542
    %v707 = vunpack.c.l.b16 %v543
    %v708 = vunpack.c.h.b16 %v543
    %v709 = vunpack.c.l.b16 %v544
    %v710 = vunpack.c.h.b16 %v544
    %v711 = vunpack.c.l.b16 %v545
    %v712 = vunpack.c.h.b16 %v545
    %v713 = vunpack.c.l.b16 %v546
    %v714 = vunpack.c.h.b16 %v546
    %v715 = vunpack.c.l.b16 %v547
    %v716 = vunpack.c.h.b16 %v547
    %v717 = vunpack.c.l.b16 %v548
    %v718 = vunpack.c.h.b16 %v548
    %v719 = vunpack.c.l.b16 %v549
    %v720 = vunpack.c.h.b16 %v549
    %v721 = vunpack.c.l.b16 %v550
    %v722 = vunpack.c.h.b16 %v550
    %v723 = vunpack.c.l.b16 %v551
    %v724 = vunpack.c.h.b16 %v551
    %v725 = vunpack.c.l.b16 %v552
    %v726 = vunpack.c.h.b16 %v552
    %v727 = vunpack.c.l.b16 %v553
    %v728 = vunpack.c.h.b16 %v553
    %v729 = vunpack.c.l.b16 %v554
    %v730 = vunpack.c.h.b16 %v554
    %v731 = vunpack.c.l.b16 %v555
    %v732 = vunpack.c.h.b16 %v555
    %v733 = vunpack.c.l.b16 %v556
    %v734 = vunpack.c.h.b16 %v556
    %v735 = vunpack.c.l.b16 %v557
    %v736 = vunpack.c.h.b16 %v557
    %v737 = vunpack.c.l.b16 %v558
    %v738 = vunpack.c.h.b16 %v558
    %v739 = vunpack.c.l.b16 %v559
    %v740 = vunpack.c.h.b16 %v559
    %v741 = vunpack.c.l.b16 %v560
    %v742 = vunpack.c.h.b16 %v560
    %v743 = vunpack.c.l.b16 %v561
    %v744 = vunpack.c.h.b16 %v561
    %v745 = vunpack.c.l.b16 %v562
    %v746 = vunpack.c.h.b16 %v562
    %v747 = vunpack.c.l.b16 %v563
    %v748 = vunpack.c.h.b16 %v563
    %v749 = vunpack.c.l.b16 %v564
    %v750 = vunpack.c.h.b16 %v564
    %v751 = vunpack.c.l.b16 %v565
    %v752 = vunpack.c.h.b16 %v565
    %v753 = vunpack.c.l.b16 %v566
    %v754 = vunpack.c.h.b16 %v566
    %v755 = vunpack.c.l.b16 %v567
    %v756 = vunpack.c.h.b16 %v567
    %v757 = vunpack.c.l.b16 %v568
    %v758 = vunpack.c.h.b16 %v568
    %v759 = vunpack.c.l.b16 %v569
    %v760 = vunpack.c.h.b16 %v569
    %v761 = vunpack.c.l.b16 %v570
    %v762 = vunpack.c.h.b16 %v570
    %v763 = vunpack.c.l.b16 %v571
    %v764 = vunpack.c.h.b16 %v571
    %v765 = vunpack.c.l.b16 %v572
    %v766 = vunpack.c.h.b16 %v572
    %v767 = vunpack.c.l.b16 %v573
    %v768 = vunpack.c.h.b16 %v573
    %v769 = vunpack.c.l.b16 %v574
    %v770 = vunpack.c.h.b16 %v574
    %v771 = vunpack.c.l.b16 %v575
    %v772 = vunpack.c.h.b16 %v575
    %v773 = vunpack.c.l.b16 %v576
    %v774 = vunpack.c.h.b16 %v576
    %v775 = vunpack.c.l.b16 %v577
    %v776 = vunpack.c.h.b16 %v577
    %v777 = vunpack.c.l.b16 %v578
    %v778 = vunpack.c.h.b16 %v578
    %v779 = vunpack.c.l.b16 %v579
    %v780 = vunpack.c.h.b16 %v579
    %v781 = vunpack.c.l.b16 %v580
    %v782 = vunpack.c.h.b16 %v580
    %v783 = vunpack.c.l.b16 %v581
    %v784 = vunpack.c.h.b16 %v581
    %v785 = vunpack.c.l.b16 %v582
    %v786 = vunpack.c.h.b16 %v582
    %v787 = vpack.c.b16 %v663, %v659
    %v788 = vpack.c.b16 %v664, %v660
    %v789 = vpack.c.b16 %v665, %v661
    %v790 = vpack.c.b16 %v666, %v662
    %v791 = vpack.c.b16 %v671, %v667
    %v792 = vpack.c.b16 %v672, %v668
    %v793 = vpack.c.b16 %v673, %v669
    %v794 = vpack.c.b16 %v674, %v670
    %v795 = vpack.c.b16 %v679, %v675
    %v796 = vpack.c.b16 %v680, %v676
    %v797 = vpack.c.b16 %v681, %v677
    %v798 = vpack.c.b16 %v682, %v678
    %v799 = vpack.c.b16 %v687, %v683
    %v800 = vpack.c.b16 %v688, %v684
    %v801 = vpack.c.b16 %v689, %v685
    %v802 = vpack.c.b16 %v690, %v686
    %v803 = vpack.c.b16 %v695, %v691
    %v804 = vpack.c.b16 %v696, %v692
    %v805 = vpack.c.b16 %v697, %v693
    %v806 = vpack.c.b16 %v698, %v694
    %v807 = vpack.c.b16 %v703, %v699
    %v808 = vpack.c.b16 %v704, %v700
    %v809 = vpack.c.b16 %v705, %v701
    %v810 = vpack.c.b16 %v706, %v702
    %v811 = vpack.c.b16 %v711, %v707
    %v812 = vpack.c.b16 %v712, %v708
    %v813 = vpack.c.b16 %v713, %v709
    %v814 = vpack.c.b16 %v714, %v710
    %v815 = vpack.c.b16 %v719, %v715
    %v816 = vpack.c.b16 %v720, %v716
    %v817 = vpack.c.b16 %v721, %v717
    %v818 = vpack.c.b16 %v722, %v718
    %v819 = vpack.c.b16 %v727, %v723
    %v820 = vpack.c.b16 %v728, %v724
    %v821 = vpack.c.b16 %v729, %v725
    %v822 = vpack.c.b16 %v730, %v726
    %v823 = vpack.c.b16 %v735, %v731
    %v824 = vpack.c.b16 %v736, %v732
    %v825 = vpack.c.b16 %v737, %v733
    %v826 = vpack.c.b16 %v738, %v734
    %v827 = vpack.c.b16 %v743, %v739
    %v828 = vpack.c.b16 %v744, %v740
    %v829 = vpack.c.b16 %v745, %v741
    %v830 = vpack.c.b16 %v746, %v742
    %v831 = vpack.c.b16 %v751, %v747
    %v832 = vpack.c.b16 %v752, %v748
    %v833 = vpack.c.b16 %v753, %v749
    %v834 = vpack.c.b16 %v754, %v750
    %v835 = vpack.c.b16 %v759, %v755
    %v836 = vpack.c.b16 %v760, %v756
    %v837 = vpack.c.b16 %v761, %v757
    %v838 = vpack.c.b16 %v762, %v758
    %v839 = vpack.c.b16 %v767, %v763
    %v840 = vpack.c.b16 %v768, %v764
    %v841 = vpack.c.b16 %v769, %v765
    %v842 = vpack.c.b16 %v770, %v766
    %v843 = vpack.c.b16 %v775, %v771
    %v844 = vpack.c.b16 %v776, %v772
    %v845 = vpack.c.b16 %v777, %v773
    %v846 = vpack.c.b16 %v778, %v774
    %v847 = vpack.c.b16 %v783, %v779
    %v848 = vpack.c.b16 %v784, %v780
    %v849 = vpack.c.b16 %v785, %v781
    %v850 = vpack.c.b16 %v786, %v782
    %915 = vmatprep.subr.bf16.mxu0 %v816
    %916 = vmatpush1.bf16.msra.mxu0 %v815
    %917 = vmatprep.subr.bf16.mxu0 %v812
    %918 = vmatpush1.bf16.msra.mxu0 %v811
    %919 = vmatprep.subr.bf16.mxu0 %v808
    %920 = vmatpush1.bf16.msra.mxu0 %v807
    %921 = vmatprep.subr.bf16.mxu0 %v804
    %922 = vmatpush1.bf16.msra.mxu0 %v803
    %923 = vmatprep.subr.bf16.mxu0 %v800
    %924 = vmatpush1.bf16.msra.mxu0 %v799
    %925 = vmatprep.subr.bf16.mxu0 %v796
    %926 = vmatpush1.bf16.msra.mxu0 %v795
    %927 = vmatprep.subr.bf16.mxu0 %v792
    %928 = vmatpush1.bf16.msra.mxu0 %v791
    %929 = vmatprep.subr.bf16.mxu0 %v788
    %930 = vmatpush1.bf16.msra.mxu0 %v787
    %931 = vmatprep.subr.bf16.mxu0 %v848
    %932 = vmatpush2.bf16.msra.mxu0 %v847
    %933 = vmatprep.subr.bf16.mxu0 %v844
    %934 = vmatpush2.bf16.msra.mxu0 %v843
    %935 = vmatprep.subr.bf16.mxu0 %v840
    %936 = vmatpush2.bf16.msra.mxu0 %v839
    %937 = vmatprep.subr.bf16.mxu0 %v836
    %938 = vmatpush2.bf16.msra.mxu0 %v835
    %939 = vmatprep.subr.bf16.mxu0 %v832
    %940 = vmatpush2.bf16.msra.mxu0 %v831
    %941 = vmatprep.subr.bf16.mxu0 %v828
    %942 = vmatpush2.bf16.msra.mxu0 %v827
    %943 = vmatprep.subr.bf16.mxu0 %v824
    %944 = vmatpush2.bf16.msra.mxu0 %v823
    %945 = vmatprep.subr.bf16.mxu0 %v820
    %946 = vmatpush2.bf16.msra.mxu0 %v819
    %947 = vmatprep.mubr.bf16.mxu0 %v592
    %948 = vmatmul.mubr.bf16.gmra.mxu0 %v591
    %v949 = vpop.f32.mrf.mxu0
    %v950 = vadd.f32 0.0, %v949
    %v951 = vpop.f32.mrf.mxu0
    %v952 = vadd.f32 0.0, %v951
    %v953 = vpop.f32.mrf.mxu0
    %v954 = vpop.f32.mrf.mxu0
    %955 = vdwg.mxu0
    %956 = vmatprep.subr.bf16.mxu0 %v818
    %957 = vmatpush1.bf16.msra.mxu0 %v817
    %958 = vmatprep.subr.bf16.mxu0 %v814
    %959 = vmatpush1.bf16.msra.mxu0 %v813
    %960 = vmatprep.subr.bf16.mxu0 %v810
    %961 = vmatpush1.bf16.msra.mxu0 %v809
    %962 = vmatprep.subr.bf16.mxu0 %v806
    %963 = vmatpush1.bf16.msra.mxu0 %v805
    %964 = vmatprep.subr.bf16.mxu0 %v802
    %965 = vmatpush1.bf16.msra.mxu0 %v801
    %966 = vmatprep.subr.bf16.mxu0 %v798
    %967 = vmatpush1.bf16.msra.mxu0 %v797
    %968 = vmatprep.subr.bf16.mxu0 %v794
    %969 = vmatpush1.bf16.msra.mxu0 %v793
    %970 = vmatprep.subr.bf16.mxu0 %v790
    %971 = vmatpush1.bf16.msra.mxu0 %v789
    %972 = vmatprep.subr.bf16.mxu0 %v850
    %973 = vmatpush2.bf16.msra.mxu0 %v849
    %974 = vmatprep.subr.bf16.mxu0 %v846
    %975 = vmatpush2.bf16.msra.mxu0 %v845
    %976 = vmatprep.subr.bf16.mxu0 %v842
    %977 = vmatpush2.bf16.msra.mxu0 %v841
    %978 = vmatprep.subr.bf16.mxu0 %v838
    %979 = vmatpush2.bf16.msra.mxu0 %v837
    %980 = vmatprep.subr.bf16.mxu0 %v834
    %981 = vmatpush2.bf16.msra.mxu0 %v833
    %982 = vmatprep.subr.bf16.mxu0 %v830
    %983 = vmatpush2.bf16.msra.mxu0 %v829
    %984 = vmatprep.subr.bf16.mxu0 %v826
    %985 = vmatpush2.bf16.msra.mxu0 %v825
    %986 = vmatprep.subr.bf16.mxu0 %v822
    %987 = vmatpush2.bf16.msra.mxu0 %v821
    %988 = vmatprep.mubr.bf16.mxu0 %v592
    %989 = vmatmul.mubr.bf16.gmra.mxu0 %v591
    %v990 = vpop.f32.mrf.mxu0
    %v991 = vadd.f32 0.0, %v990
    %v992 = vpop.f32.mrf.mxu0
    %v993 = vadd.f32 0.0, %v992
    %v994 = vpop.f32.mrf.mxu0
    %v995 = vpop.f32.mrf.mxu0
    %996 = vdwg.mxu0
    %v998 = vunpack.c.l.b16 %v451
    %v999 = vunpack.c.h.b16 %v451
    %v1000 = vpack.c.b16 %v998, %v998
    %v1001 = vpack.c.b16 %v999, %v999
    %v1068 = vunpack.c.l.b16 %v452
    %v1069 = vunpack.c.h.b16 %v452
    %v1070 = vunpack.c.l.b16 %v453
    %v1071 = vunpack.c.h.b16 %v453
    %v1072 = vunpack.c.l.b16 %v454
    %v1073 = vunpack.c.h.b16 %v454
    %v1074 = vunpack.c.l.b16 %v455
    %v1075 = vunpack.c.h.b16 %v455
    %v1076 = vunpack.c.l.b16 %v456
    %v1077 = vunpack.c.h.b16 %v456
    %v1078 = vunpack.c.l.b16 %v457
    %v1079 = vunpack.c.h.b16 %v457
    %v1080 = vunpack.c.l.b16 %v458
    %v1081 = vunpack.c.h.b16 %v458
    %v1082 = vunpack.c.l.b16 %v459
    %v1083 = vunpack.c.h.b16 %v459
    %v1084 = vunpack.c.l.b16 %v460
    %v1085 = vunpack.c.h.b16 %v460
    %v1086 = vunpack.c.l.b16 %v461
    %v1087 = vunpack.c.h.b16 %v461
    %v1088 = vunpack.c.l.b16 %v462
    %v1089 = vunpack.c.h.b16 %v462
    %v1090 = vunpack.c.l.b16 %v463
    %v1091 = vunpack.c.h.b16 %v463
    %v1092 = vunpack.c.l.b16 %v464
    %v1093 = vunpack.c.h.b16 %v464
    %v1094 = vunpack.c.l.b16 %v465
    %v1095 = vunpack.c.h.b16 %v465
    %v1096 = vunpack.c.l.b16 %v466
    %v1097 = vunpack.c.h.b16 %v466
    %v1098 = vunpack.c.l.b16 %v467
    %v1099 = vunpack.c.h.b16 %v467
    %v1100 = vunpack.c.l.b16 %v468
    %v1101 = vunpack.c.h.b16 %v468
    %v1102 = vunpack.c.l.b16 %v469
    %v1103 = vunpack.c.h.b16 %v469
    %v1104 = vunpack.c.l.b16 %v470
    %v1105 = vunpack.c.h.b16 %v470
    %v1106 = vunpack.c.l.b16 %v471
    %v1107 = vunpack.c.h.b16 %v471
    %v1108 = vunpack.c.l.b16 %v472
    %v1109 = vunpack.c.h.b16 %v472
    %v1110 = vunpack.c.l.b16 %v473
    %v1111 = vunpack.c.h.b16 %v473
    %v1112 = vunpack.c.l.b16 %v474
    %v1113 = vunpack.c.h.b16 %v474
    %v1114 = vunpack.c.l.b16 %v475
    %v1115 = vunpack.c.h.b16 %v475
    %v1116 = vunpack.c.l.b16 %v476
    %v1117 = vunpack.c.h.b16 %v476
    %v1118 = vunpack.c.l.b16 %v477
    %v1119 = vunpack.c.h.b16 %v477
    %v1120 = vunpack.c.l.b16 %v478
    %v1121 = vunpack.c.h.b16 %v478
    %v1122 = vunpack.c.l.b16 %v479
    %v1123 = vunpack.c.h.b16 %v479
    %v1124 = vunpack.c.l.b16 %v480
    %v1125 = vunpack.c.h.b16 %v480
    %v1126 = vunpack.c.l.b16 %v481
    %v1127 = vunpack.c.h.b16 %v481
    %v1128 = vunpack.c.l.b16 %v482
    %v1129 = vunpack.c.h.b16 %v482
    %v1130 = vunpack.c.l.b16 %v483
    %v1131 = vunpack.c.h.b16 %v483
    %v1132 = vunpack.c.l.b16 %v484
    %v1133 = vunpack.c.h.b16 %v484
    %v1134 = vunpack.c.l.b16 %v485
    %v1135 = vunpack.c.h.b16 %v485
    %v1136 = vunpack.c.l.b16 %v486
    %v1137 = vunpack.c.h.b16 %v486
    %v1138 = vunpack.c.l.b16 %v487
    %v1139 = vunpack.c.h.b16 %v487
    %v1140 = vunpack.c.l.b16 %v488
    %v1141 = vunpack.c.h.b16 %v488
    %v1142 = vunpack.c.l.b16 %v489
    %v1143 = vunpack.c.h.b16 %v489
    %v1144 = vunpack.c.l.b16 %v490
    %v1145 = vunpack.c.h.b16 %v490
    %v1146 = vunpack.c.l.b16 %v491
    %v1147 = vunpack.c.h.b16 %v491
    %v1148 = vunpack.c.l.b16 %v492
    %v1149 = vunpack.c.h.b16 %v492
    %v1150 = vunpack.c.l.b16 %v493
    %v1151 = vunpack.c.h.b16 %v493
    %v1152 = vunpack.c.l.b16 %v494
    %v1153 = vunpack.c.h.b16 %v494
    %v1154 = vunpack.c.l.b16 %v495
    %v1155 = vunpack.c.h.b16 %v495
    %v1156 = vunpack.c.l.b16 %v496
    %v1157 = vunpack.c.h.b16 %v496
    %v1158 = vunpack.c.l.b16 %v497
    %v1159 = vunpack.c.h.b16 %v497
    %v1160 = vunpack.c.l.b16 %v498
    %v1161 = vunpack.c.h.b16 %v498
    %v1162 = vunpack.c.l.b16 %v499
    %v1163 = vunpack.c.h.b16 %v499
    %v1164 = vunpack.c.l.b16 %v500
    %v1165 = vunpack.c.h.b16 %v500
    %v1166 = vunpack.c.l.b16 %v501
    %v1167 = vunpack.c.h.b16 %v501
    %v1168 = vunpack.c.l.b16 %v502
    %v1169 = vunpack.c.h.b16 %v502
    %v1170 = vunpack.c.l.b16 %v503
    %v1171 = vunpack.c.h.b16 %v503
    %v1172 = vunpack.c.l.b16 %v504
    %v1173 = vunpack.c.h.b16 %v504
    %v1174 = vunpack.c.l.b16 %v505
    %v1175 = vunpack.c.h.b16 %v505
    %v1176 = vunpack.c.l.b16 %v506
    %v1177 = vunpack.c.h.b16 %v506
    %v1178 = vunpack.c.l.b16 %v507
    %v1179 = vunpack.c.h.b16 %v507
    %v1180 = vunpack.c.l.b16 %v508
    %v1181 = vunpack.c.h.b16 %v508
    %v1182 = vunpack.c.l.b16 %v509
    %v1183 = vunpack.c.h.b16 %v509
    %v1184 = vunpack.c.l.b16 %v510
    %v1185 = vunpack.c.h.b16 %v510
    %v1186 = vunpack.c.l.b16 %v511
    %v1187 = vunpack.c.h.b16 %v511
    %v1188 = vunpack.c.l.b16 %v512
    %v1189 = vunpack.c.h.b16 %v512
    %v1190 = vunpack.c.l.b16 %v513
    %v1191 = vunpack.c.h.b16 %v513
    %v1192 = vunpack.c.l.b16 %v514
    %v1193 = vunpack.c.h.b16 %v514
    %v1194 = vunpack.c.l.b16 %v515
    %v1195 = vunpack.c.h.b16 %v515
    %v1196 = vpack.c.b16 %v1072, %v1068
    %v1197 = vpack.c.b16 %v1073, %v1069
    %v1198 = vpack.c.b16 %v1074, %v1070
    %v1199 = vpack.c.b16 %v1075, %v1071
    %v1200 = vpack.c.b16 %v1080, %v1076
    %v1201 = vpack.c.b16 %v1081, %v1077
    %v1202 = vpack.c.b16 %v1082, %v1078
    %v1203 = vpack.c.b16 %v1083, %v1079
    %v1204 = vpack.c.b16 %v1088, %v1084
    %v1205 = vpack.c.b16 %v1089, %v1085
    %v1206 = vpack.c.b16 %v1090, %v1086
    %v1207 = vpack.c.b16 %v1091, %v1087
    %v1208 = vpack.c.b16 %v1096, %v1092
    %v1209 = vpack.c.b16 %v1097, %v1093
    %v1210 = vpack.c.b16 %v1098, %v1094
    %v1211 = vpack.c.b16 %v1099, %v1095
    %v1212 = vpack.c.b16 %v1104, %v1100
    %v1213 = vpack.c.b16 %v1105, %v1101
    %v1214 = vpack.c.b16 %v1106, %v1102
    %v1215 = vpack.c.b16 %v1107, %v1103
    %v1216 = vpack.c.b16 %v1112, %v1108
    %v1217 = vpack.c.b16 %v1113, %v1109
    %v1218 = vpack.c.b16 %v1114, %v1110
    %v1219 = vpack.c.b16 %v1115, %v1111
    %v1220 = vpack.c.b16 %v1120, %v1116
    %v1221 = vpack.c.b16 %v1121, %v1117
    %v1222 = vpack.c.b16 %v1122, %v1118
    %v1223 = vpack.c.b16 %v1123, %v1119
    %v1224 = vpack.c.b16 %v1128, %v1124
    %v1225 = vpack.c.b16 %v1129, %v1125
    %v1226 = vpack.c.b16 %v1130, %v1126
    %v1227 = vpack.c.b16 %v1131, %v1127
    %v1228 = vpack.c.b16 %v1136, %v1132
    %v1229 = vpack.c.b16 %v1137, %v1133
    %v1230 = vpack.c.b16 %v1138, %v1134
    %v1231 = vpack.c.b16 %v1139, %v1135
    %v1232 = vpack.c.b16 %v1144, %v1140
    %v1233 = vpack.c.b16 %v1145, %v1141
    %v1234 = vpack.c.b16 %v1146, %v1142
    %v1235 = vpack.c.b16 %v1147, %v1143
    %v1236 = vpack.c.b16 %v1152, %v1148
    %v1237 = vpack.c.b16 %v1153, %v1149
    %v1238 = vpack.c.b16 %v1154, %v1150
    %v1239 = vpack.c.b16 %v1155, %v1151
    %v1240 = vpack.c.b16 %v1160, %v1156
    %v1241 = vpack.c.b16 %v1161, %v1157
    %v1242 = vpack.c.b16 %v1162, %v1158
    %v1243 = vpack.c.b16 %v1163, %v1159
    %v1244 = vpack.c.b16 %v1168, %v1164
    %v1245 = vpack.c.b16 %v1169, %v1165
    %v1246 = vpack.c.b16 %v1170, %v1166
    %v1247 = vpack.c.b16 %v1171, %v1167
    %v1248 = vpack.c.b16 %v1176, %v1172
    %v1249 = vpack.c.b16 %v1177, %v1173
    %v1250 = vpack.c.b16 %v1178, %v1174
    %v1251 = vpack.c.b16 %v1179, %v1175
    %v1252 = vpack.c.b16 %v1184, %v1180
    %v1253 = vpack.c.b16 %v1185, %v1181
    %v1254 = vpack.c.b16 %v1186, %v1182
    %v1255 = vpack.c.b16 %v1187, %v1183
    %v1256 = vpack.c.b16 %v1192, %v1188
    %v1257 = vpack.c.b16 %v1193, %v1189
    %v1258 = vpack.c.b16 %v1194, %v1190
    %v1259 = vpack.c.b16 %v1195, %v1191
    %1324 = vmatprep.subr.bf16.mxu0 %v1225
    %1325 = vmatpush1.bf16.msra.mxu0 %v1224
    %1326 = vmatprep.subr.bf16.mxu0 %v1221
    %1327 = vmatpush1.bf16.msra.mxu0 %v1220
    %1328 = vmatprep.subr.bf16.mxu0 %v1217
    %1329 = vmatpush1.bf16.msra.mxu0 %v1216
    %1330 = vmatprep.subr.bf16.mxu0 %v1213
    %1331 = vmatpush1.bf16.msra.mxu0 %v1212
    %1332 = vmatprep.subr.bf16.mxu0 %v1209
    %1333 = vmatpush1.bf16.msra.mxu0 %v1208
    %1334 = vmatprep.subr.bf16.mxu0 %v1205
    %1335 = vmatpush1.bf16.msra.mxu0 %v1204
    %1336 = vmatprep.subr.bf16.mxu0 %v1201
    %1337 = vmatpush1.bf16.msra.mxu0 %v1200
    %1338 = vmatprep.subr.bf16.mxu0 %v1197
    %1339 = vmatpush1.bf16.msra.mxu0 %v1196
    %1340 = vmatprep.subr.bf16.mxu0 %v1257
    %1341 = vmatpush2.bf16.msra.mxu0 %v1256
    %1342 = vmatprep.subr.bf16.mxu0 %v1253
    %1343 = vmatpush2.bf16.msra.mxu0 %v1252
    %1344 = vmatprep.subr.bf16.mxu0 %v1249
    %1345 = vmatpush2.bf16.msra.mxu0 %v1248
    %1346 = vmatprep.subr.bf16.mxu0 %v1245
    %1347 = vmatpush2.bf16.msra.mxu0 %v1244
    %1348 = vmatprep.subr.bf16.mxu0 %v1241
    %1349 = vmatpush2.bf16.msra.mxu0 %v1240
    %1350 = vmatprep.subr.bf16.mxu0 %v1237
    %1351 = vmatpush2.bf16.msra.mxu0 %v1236
    %1352 = vmatprep.subr.bf16.mxu0 %v1233
    %1353 = vmatpush2.bf16.msra.mxu0 %v1232
    %1354 = vmatprep.subr.bf16.mxu0 %v1229
    %1355 = vmatpush2.bf16.msra.mxu0 %v1228
    %1356 = vmatprep.mubr.bf16.mxu0 %v1001
    %1357 = vmatmul.mubr.bf16.gmra.mxu0 %v1000
    %v1358 = vpop.f32.mrf.mxu0
    %v1359 = vadd.f32 %v950, %v1358
    %v1360 = vpop.f32.mrf.mxu0
    %v1361 = vadd.f32 %v952, %v1360
    %v1362 = vpop.f32.mrf.mxu0
    %v1363 = vpop.f32.mrf.mxu0
    %1364 = vdwg.mxu0
    %1365 = vmatprep.subr.bf16.mxu0 %v1227
    %1366 = vmatpush1.bf16.msra.mxu0 %v1226
    %1367 = vmatprep.subr.bf16.mxu0 %v1223
    %1368 = vmatpush1.bf16.msra.mxu0 %v1222
    %1369 = vmatprep.subr.bf16.mxu0 %v1219
    %1370 = vmatpush1.bf16.msra.mxu0 %v1218
    %1371 = vmatprep.subr.bf16.mxu0 %v1215
    %1372 = vmatpush1.bf16.msra.mxu0 %v1214
    %1373 = vmatprep.subr.bf16.mxu0 %v1211
    %1374 = vmatpush1.bf16.msra.mxu0 %v1210
    %1375 = vmatprep.subr.bf16.mxu0 %v1207
    %1376 = vmatpush1.bf16.msra.mxu0 %v1206
    %1377 = vmatprep.subr.bf16.mxu0 %v1203
    %1378 = vmatpush1.bf16.msra.mxu0 %v1202
    %1379 = vmatprep.subr.bf16.mxu0 %v1199
    %1380 = vmatpush1.bf16.msra.mxu0 %v1198
    %1381 = vmatprep.subr.bf16.mxu0 %v1259
    %1382 = vmatpush2.bf16.msra.mxu0 %v1258
    %1383 = vmatprep.subr.bf16.mxu0 %v1255
    %1384 = vmatpush2.bf16.msra.mxu0 %v1254
    %1385 = vmatprep.subr.bf16.mxu0 %v1251
    %1386 = vmatpush2.bf16.msra.mxu0 %v1250
    %1387 = vmatprep.subr.bf16.mxu0 %v1247
    %1388 = vmatpush2.bf16.msra.mxu0 %v1246
    %1389 = vmatprep.subr.bf16.mxu0 %v1243
    %1390 = vmatpush2.bf16.msra.mxu0 %v1242
    %1391 = vmatprep.subr.bf16.mxu0 %v1239
    %1392 = vmatpush2.bf16.msra.mxu0 %v1238
    %1393 = vmatprep.subr.bf16.mxu0 %v1235
    %1394 = vmatpush2.bf16.msra.mxu0 %v1234
    %1395 = vmatprep.subr.bf16.mxu0 %v1231
    %1396 = vmatpush2.bf16.msra.mxu0 %v1230
    %1397 = vmatprep.mubr.bf16.mxu0 %v1001
    %1398 = vmatmul.mubr.bf16.gmra.mxu0 %v1000
    %v1399 = vpop.f32.mrf.mxu0
    %v1400 = vadd.f32 %v991, %v1399
    %v1401 = vpop.f32.mrf.mxu0
    %v1402 = vadd.f32 %v993, %v1401
    %v1403 = vpop.f32.mrf.mxu0
    %v1404 = vpop.f32.mrf.mxu0
    %1405 = vdwg.mxu0
    %v1406 = vld [vmem:[#allocation2] sm:$0xcc]
    %v1407 = vld [vmem:[#allocation2 + $0x8] sm:$0x33]
    %s1408 = scalar_lea.vmem %s3, 1024
    %v1409 = vld [vmem:[%s1408] sm:$0xff]
    %v1410 = vld [vmem:[%s1408 + $0x8] sm:$0xff]
    %v1411 = vld [vmem:[%s1408 + $0x10] sm:$0xff]
    %v1412 = vld [vmem:[%s1408 + $0x18] sm:$0xff]
    %v1413 = vld [vmem:[%s1408 + $0x20] sm:$0xff]
    %v1414 = vld [vmem:[%s1408 + $0x28] sm:$0xff]
    %v1415 = vld [vmem:[%s1408 + $0x30] sm:$0xff]
    %v1416 = vld [vmem:[%s1408 + $0x38] sm:$0xff]
    %v1417 = vld [vmem:[%s1408 + $0x40] sm:$0xff]
    %v1418 = vld [vmem:[%s1408 + $0x48] sm:$0xff]
    %v1419 = vld [vmem:[%s1408 + $0x50] sm:$0xff]
    %v1420 = vld [vmem:[%s1408 + $0x58] sm:$0xff]
    %v1421 = vld [vmem:[%s1408 + $0x60] sm:$0xff]
    %v1422 = vld [vmem:[%s1408 + $0x68] sm:$0xff]
    %v1423 = vld [vmem:[%s1408 + $0x70] sm:$0xff]
    %v1424 = vld [vmem:[%s1408 + $0x78] sm:$0xff]
    %v1425 = vld [vmem:[%s1408 + $0x80] sm:$0xff]
    %v1426 = vld [vmem:[%s1408 + $0x88] sm:$0xff]
    %v1427 = vld [vmem:[%s1408 + $0x90] sm:$0xff]
    %v1428 = vld [vmem:[%s1408 + $0x98] sm:$0xff]
    %v1429 = vld [vmem:[%s1408 + $0xa0] sm:$0xff]
    %v1430 = vld [vmem:[%s1408 + $0xa8] sm:$0xff]
    %v1431 = vld [vmem:[%s1408 + $0xb0] sm:$0xff]
    %v1432 = vld [vmem:[%s1408 + $0xb8] sm:$0xff]
    %v1433 = vld [vmem:[%s1408 + $0xc0] sm:$0xff]
    %v1434 = vld [vmem:[%s1408 + $0xc8] sm:$0xff]
    %v1435 = vld [vmem:[%s1408 + $0xd0] sm:$0xff]
    %v1436 = vld [vmem:[%s1408 + $0xd8] sm:$0xff]
    %v1437 = vld [vmem:[%s1408 + $0xe0] sm:$0xff]
    %v1438 = vld [vmem:[%s1408 + $0xe8] sm:$0xff]
    %v1439 = vld [vmem:[%s1408 + $0xf0] sm:$0xff]
    %v1440 = vld [vmem:[%s1408 + $0xf8] sm:$0xff]
    %v1441 = vld [vmem:[%s1408 + $0x100] sm:$0xff]
    %v1442 = vld [vmem:[%s1408 + $0x108] sm:$0xff]
    %v1443 = vld [vmem:[%s1408 + $0x110] sm:$0xff]
    %v1444 = vld [vmem:[%s1408 + $0x118] sm:$0xff]
    %v1445 = vld [vmem:[%s1408 + $0x120] sm:$0xff]
    %v1446 = vld [vmem:[%s1408 + $0x128] sm:$0xff]
    %v1447 = vld [vmem:[%s1408 + $0x130] sm:$0xff]
    %v1448 = vld [vmem:[%s1408 + $0x138] sm:$0xff]
    %v1449 = vld [vmem:[%s1408 + $0x140] sm:$0xff]
    %v1450 = vld [vmem:[%s1408 + $0x148] sm:$0xff]
    %v1451 = vld [vmem:[%s1408 + $0x150] sm:$0xff]
    %v1452 = vld [vmem:[%s1408 + $0x158] sm:$0xff]
    %v1453 = vld [vmem:[%s1408 + $0x160] sm:$0xff]
    %v1454 = vld [vmem:[%s1408 + $0x168] sm:$0xff]
    %v1455 = vld [vmem:[%s1408 + $0x170] sm:$0xff]
    %v1456 = vld [vmem:[%s1408 + $0x178] sm:$0xff]
    %v1457 = vld [vmem:[%s1408 + $0x180] sm:$0xff]
    %v1458 = vld [vmem:[%s1408 + $0x188] sm:$0xff]
    %v1459 = vld [vmem:[%s1408 + $0x190] sm:$0xff]
    %v1460 = vld [vmem:[%s1408 + $0x198] sm:$0xff]
    %v1461 = vld [vmem:[%s1408 + $0x1a0] sm:$0xff]
    %v1462 = vld [vmem:[%s1408 + $0x1a8] sm:$0xff]
    %v1463 = vld [vmem:[%s1408 + $0x1b0] sm:$0xff]
    %v1464 = vld [vmem:[%s1408 + $0x1b8] sm:$0xff]
    %v1465 = vld [vmem:[%s1408 + $0x1c0] sm:$0xff]
    %v1466 = vld [vmem:[%s1408 + $0x1c8] sm:$0xff]
    %v1467 = vld [vmem:[%s1408 + $0x1d0] sm:$0xff]
    %v1468 = vld [vmem:[%s1408 + $0x1d8] sm:$0xff]
    %v1469 = vld [vmem:[%s1408 + $0x1e0] sm:$0xff]
    %v1470 = vld [vmem:[%s1408 + $0x1e8] sm:$0xff]
    %v1471 = vld [vmem:[%s1408 + $0x1f0] sm:$0xff]
    %v1472 = vld [vmem:[%s1408 + $0x1f8] sm:$0xff]
    %v1475 = vunpack.c.l.b16 %v1406
    %v1476 = vunpack.c.h.b16 %v1406
    %v1477 = vunpack.c.l.b16 %v1407
    %v1478 = vunpack.c.h.b16 %v1407
    %v1479 = vpack.c.b16 %v1477, %v1475
    %v1480 = vpack.c.b16 %v1478, %v1476
    %v1481 = vrot.slane %v1479, 2
    %v1482 = vrot.slane %v1480, 2
    %v1549 = vunpack.c.l.b16 %v1409
    %v1550 = vunpack.c.h.b16 %v1409
    %v1551 = vunpack.c.l.b16 %v1410
    %v1552 = vunpack.c.h.b16 %v1410
    %v1553 = vunpack.c.l.b16 %v1411
    %v1554 = vunpack.c.h.b16 %v1411
    %v1555 = vunpack.c.l.b16 %v1412
    %v1556 = vunpack.c.h.b16 %v1412
    %v1557 = vunpack.c.l.b16 %v1413
    %v1558 = vunpack.c.h.b16 %v1413
    %v1559 = vunpack.c.l.b16 %v1414
    %v1560 = vunpack.c.h.b16 %v1414
    %v1561 = vunpack.c.l.b16 %v1415
    %v1562 = vunpack.c.h.b16 %v1415
    %v1563 = vunpack.c.l.b16 %v1416
    %v1564 = vunpack.c.h.b16 %v1416
    %v1565 = vunpack.c.l.b16 %v1417
    %v1566 = vunpack.c.h.b16 %v1417
    %v1567 = vunpack.c.l.b16 %v1418
    %v1568 = vunpack.c.h.b16 %v1418
    %v1569 = vunpack.c.l.b16 %v1419
    %v1570 = vunpack.c.h.b16 %v1419
    %v1571 = vunpack.c.l.b16 %v1420
    %v1572 = vunpack.c.h.b16 %v1420
    %v1573 = vunpack.c.l.b16 %v1421
    %v1574 = vunpack.c.h.b16 %v1421
    %v1575 = vunpack.c.l.b16 %v1422
    %v1576 = vunpack.c.h.b16 %v1422
    %v1577 = vunpack.c.l.b16 %v1423
    %v1578 = vunpack.c.h.b16 %v1423
    %v1579 = vunpack.c.l.b16 %v1424
    %v1580 = vunpack.c.h.b16 %v1424
    %v1581 = vunpack.c.l.b16 %v1425
    %v1582 = vunpack.c.h.b16 %v1425
    %v1583 = vunpack.c.l.b16 %v1426
    %v1584 = vunpack.c.h.b16 %v1426
    %v1585 = vunpack.c.l.b16 %v1427
    %v1586 = vunpack.c.h.b16 %v1427
    %v1587 = vunpack.c.l.b16 %v1428
    %v1588 = vunpack.c.h.b16 %v1428
    %v1589 = vunpack.c.l.b16 %v1429
    %v1590 = vunpack.c.h.b16 %v1429
    %v1591 = vunpack.c.l.b16 %v1430
    %v1592 = vunpack.c.h.b16 %v1430
    %v1593 = vunpack.c.l.b16 %v1431
    %v1594 = vunpack.c.h.b16 %v1431
    %v1595 = vunpack.c.l.b16 %v1432
    %v1596 = vunpack.c.h.b16 %v1432
    %v1597 = vunpack.c.l.b16 %v1433
    %v1598 = vunpack.c.h.b16 %v1433
    %v1599 = vunpack.c.l.b16 %v1434
    %v1600 = vunpack.c.h.b16 %v1434
    %v1601 = vunpack.c.l.b16 %v1435
    %v1602 = vunpack.c.h.b16 %v1435
    %v1603 = vunpack.c.l.b16 %v1436
    %v1604 = vunpack.c.h.b16 %v1436
    %v1605 = vunpack.c.l.b16 %v1437
    %v1606 = vunpack.c.h.b16 %v1437
    %v1607 = vunpack.c.l.b16 %v1438
    %v1608 = vunpack.c.h.b16 %v1438
    %v1609 = vunpack.c.l.b16 %v1439
    %v1610 = vunpack.c.h.b16 %v1439
    %v1611 = vunpack.c.l.b16 %v1440
    %v1612 = vunpack.c.h.b16 %v1440
    %v1613 = vunpack.c.l.b16 %v1441
    %v1614 = vunpack.c.h.b16 %v1441
    %v1615 = vunpack.c.l.b16 %v1442
    %v1616 = vunpack.c.h.b16 %v1442
    %v1617 = vunpack.c.l.b16 %v1443
    %v1618 = vunpack.c.h.b16 %v1443
    %v1619 = vunpack.c.l.b16 %v1444
    %v1620 = vunpack.c.h.b16 %v1444
    %v1621 = vunpack.c.l.b16 %v1445
    %v1622 = vunpack.c.h.b16 %v1445
    %v1623 = vunpack.c.l.b16 %v1446
    %v1624 = vunpack.c.h.b16 %v1446
    %v1625 = vunpack.c.l.b16 %v1447
    %v1626 = vunpack.c.h.b16 %v1447
    %v1627 = vunpack.c.l.b16 %v1448
    %v1628 = vunpack.c.h.b16 %v1448
    %v1629 = vunpack.c.l.b16 %v1449
    %v1630 = vunpack.c.h.b16 %v1449
    %v1631 = vunpack.c.l.b16 %v1450
    %v1632 = vunpack.c.h.b16 %v1450
    %v1633 = vunpack.c.l.b16 %v1451
    %v1634 = vunpack.c.h.b16 %v1451
    %v1635 = vunpack.c.l.b16 %v1452
    %v1636 = vunpack.c.h.b16 %v1452
    %v1637 = vunpack.c.l.b16 %v1453
    %v1638 = vunpack.c.h.b16 %v1453
    %v1639 = vunpack.c.l.b16 %v1454
    %v1640 = vunpack.c.h.b16 %v1454
    %v1641 = vunpack.c.l.b16 %v1455
    %v1642 = vunpack.c.h.b16 %v1455
    %v1643 = vunpack.c.l.b16 %v1456
    %v1644 = vunpack.c.h.b16 %v1456
    %v1645 = vunpack.c.l.b16 %v1457
    %v1646 = vunpack.c.h.b16 %v1457
    %v1647 = vunpack.c.l.b16 %v1458
    %v1648 = vunpack.c.h.b16 %v1458
    %v1649 = vunpack.c.l.b16 %v1459
    %v1650 = vunpack.c.h.b16 %v1459
    %v1651 = vunpack.c.l.b16 %v1460
    %v1652 = vunpack.c.h.b16 %v1460
    %v1653 = vunpack.c.l.b16 %v1461
    %v1654 = vunpack.c.h.b16 %v1461
    %v1655 = vunpack.c.l.b16 %v1462
    %v1656 = vunpack.c.h.b16 %v1462
    %v1657 = vunpack.c.l.b16 %v1463
    %v1658 = vunpack.c.h.b16 %v1463
    %v1659 = vunpack.c.l.b16 %v1464
    %v1660 = vunpack.c.h.b16 %v1464
    %v1661 = vunpack.c.l.b16 %v1465
    %v1662 = vunpack.c.h.b16 %v1465
    %v1663 = vunpack.c.l.b16 %v1466
    %v1664 = vunpack.c.h.b16 %v1466
    %v1665 = vunpack.c.l.b16 %v1467
    %v1666 = vunpack.c.h.b16 %v1467
    %v1667 = vunpack.c.l.b16 %v1468
    %v1668 = vunpack.c.h.b16 %v1468
    %v1669 = vunpack.c.l.b16 %v1469
    %v1670 = vunpack.c.h.b16 %v1469
    %v1671 = vunpack.c.l.b16 %v1470
    %v1672 = vunpack.c.h.b16 %v1470
    %v1673 = vunpack.c.l.b16 %v1471
    %v1674 = vunpack.c.h.b16 %v1471
    %v1675 = vunpack.c.l.b16 %v1472
    %v1676 = vunpack.c.h.b16 %v1472
    %v1677 = vpack.c.b16 %v1553, %v1549
    %v1678 = vpack.c.b16 %v1554, %v1550
    %v1679 = vpack.c.b16 %v1555, %v1551
    %v1680 = vpack.c.b16 %v1556, %v1552
    %v1681 = vpack.c.b16 %v1561, %v1557
    %v1682 = vpack.c.b16 %v1562, %v1558
    %v1683 = vpack.c.b16 %v1563, %v1559
    %v1684 = vpack.c.b16 %v1564, %v1560
    %v1685 = vpack.c.b16 %v1569, %v1565
    %v1686 = vpack.c.b16 %v1570, %v1566
    %v1687 = vpack.c.b16 %v1571, %v1567
    %v1688 = vpack.c.b16 %v1572, %v1568
    %v1689 = vpack.c.b16 %v1577, %v1573
    %v1690 = vpack.c.b16 %v1578, %v1574
    %v1691 = vpack.c.b16 %v1579, %v1575
    %v1692 = vpack.c.b16 %v1580, %v1576
    %v1693 = vpack.c.b16 %v1585, %v1581
    %v1694 = vpack.c.b16 %v1586, %v1582
    %v1695 = vpack.c.b16 %v1587, %v1583
    %v1696 = vpack.c.b16 %v1588, %v1584
    %v1697 = vpack.c.b16 %v1593, %v1589
    %v1698 = vpack.c.b16 %v1594, %v1590
    %v1699 = vpack.c.b16 %v1595, %v1591
    %v1700 = vpack.c.b16 %v1596, %v1592
    %v1701 = vpack.c.b16 %v1601, %v1597
    %v1702 = vpack.c.b16 %v1602, %v1598
    %v1703 = vpack.c.b16 %v1603, %v1599
    %v1704 = vpack.c.b16 %v1604, %v1600
    %v1705 = vpack.c.b16 %v1609, %v1605
    %v1706 = vpack.c.b16 %v1610, %v1606
    %v1707 = vpack.c.b16 %v1611, %v1607
    %v1708 = vpack.c.b16 %v1612, %v1608
    %v1709 = vpack.c.b16 %v1617, %v1613
    %v1710 = vpack.c.b16 %v1618, %v1614
    %v1711 = vpack.c.b16 %v1619, %v1615
    %v1712 = vpack.c.b16 %v1620, %v1616
    %v1713 = vpack.c.b16 %v1625, %v1621
    %v1714 = vpack.c.b16 %v1626, %v1622
    %v1715 = vpack.c.b16 %v1627, %v1623
    %v1716 = vpack.c.b16 %v1628, %v1624
    %v1717 = vpack.c.b16 %v1633, %v1629
    %v1718 = vpack.c.b16 %v1634, %v1630
    %v1719 = vpack.c.b16 %v1635, %v1631
    %v1720 = vpack.c.b16 %v1636, %v1632
    %v1721 = vpack.c.b16 %v1641, %v1637
    %v1722 = vpack.c.b16 %v1642, %v1638
    %v1723 = vpack.c.b16 %v1643, %v1639
    %v1724 = vpack.c.b16 %v1644, %v1640
    %v1725 = vpack.c.b16 %v1649, %v1645
    %v1726 = vpack.c.b16 %v1650, %v1646
    %v1727 = vpack.c.b16 %v1651, %v1647
    %v1728 = vpack.c.b16 %v1652, %v1648
    %v1729 = vpack.c.b16 %v1657, %v1653
    %v1730 = vpack.c.b16 %v1658, %v1654
    %v1731 = vpack.c.b16 %v1659, %v1655
    %v1732 = vpack.c.b16 %v1660, %v1656
    %v1733 = vpack.c.b16 %v1665, %v1661
    %v1734 = vpack.c.b16 %v1666, %v1662
    %v1735 = vpack.c.b16 %v1667, %v1663
    %v1736 = vpack.c.b16 %v1668, %v1664
    %v1737 = vpack.c.b16 %v1673, %v1669
    %v1738 = vpack.c.b16 %v1674, %v1670
    %v1739 = vpack.c.b16 %v1675, %v1671
    %v1740 = vpack.c.b16 %v1676, %v1672
    %1805 = vmatprep.subr.bf16.mxu0 %v1706
    %1806 = vmatpush1.bf16.msra.mxu0 %v1705
    %1807 = vmatprep.subr.bf16.mxu0 %v1702
    %1808 = vmatpush1.bf16.msra.mxu0 %v1701
    %1809 = vmatprep.subr.bf16.mxu0 %v1698
    %1810 = vmatpush1.bf16.msra.mxu0 %v1697
    %1811 = vmatprep.subr.bf16.mxu0 %v1694
    %1812 = vmatpush1.bf16.msra.mxu0 %v1693
    %1813 = vmatprep.subr.bf16.mxu0 %v1690
    %1814 = vmatpush1.bf16.msra.mxu0 %v1689
    %1815 = vmatprep.subr.bf16.mxu0 %v1686
    %1816 = vmatpush1.bf16.msra.mxu0 %v1685
    %1817 = vmatprep.subr.bf16.mxu0 %v1682
    %1818 = vmatpush1.bf16.msra.mxu0 %v1681
    %1819 = vmatprep.subr.bf16.mxu0 %v1678
    %1820 = vmatpush1.bf16.msra.mxu0 %v1677
    %1821 = vmatprep.subr.bf16.mxu0 %v1738
    %1822 = vmatpush2.bf16.msra.mxu0 %v1737
    %1823 = vmatprep.subr.bf16.mxu0 %v1734
    %1824 = vmatpush2.bf16.msra.mxu0 %v1733
    %1825 = vmatprep.subr.bf16.mxu0 %v1730
    %1826 = vmatpush2.bf16.msra.mxu0 %v1729
    %1827 = vmatprep.subr.bf16.mxu0 %v1726
    %1828 = vmatpush2.bf16.msra.mxu0 %v1725
    %1829 = vmatprep.subr.bf16.mxu0 %v1722
    %1830 = vmatpush2.bf16.msra.mxu0 %v1721
    %1831 = vmatprep.subr.bf16.mxu0 %v1718
    %1832 = vmatpush2.bf16.msra.mxu0 %v1717
    %1833 = vmatprep.subr.bf16.mxu0 %v1714
    %1834 = vmatpush2.bf16.msra.mxu0 %v1713
    %1835 = vmatprep.subr.bf16.mxu0 %v1710
    %1836 = vmatpush2.bf16.msra.mxu0 %v1709
    %1837 = vmatprep.mubr.bf16.mxu0 %v1482
    %1838 = vmatmul.mubr.bf16.gmra.mxu0 %v1481
    %v1839 = vpop.f32.mrf.mxu0
    %v1840 = vadd.f32 0.0, %v1839
    %v1841 = vpop.f32.mrf.mxu0
    %v1842 = vadd.f32 0.0, %v1841
    %v1843 = vpop.f32.mrf.mxu0
    %v1844 = vpop.f32.mrf.mxu0
    %1845 = vdwg.mxu0
    %1846 = vmatprep.subr.bf16.mxu0 %v1708
    %1847 = vmatpush1.bf16.msra.mxu0 %v1707
    %1848 = vmatprep.subr.bf16.mxu0 %v1704
    %1849 = vmatpush1.bf16.msra.mxu0 %v1703
    %1850 = vmatprep.subr.bf16.mxu0 %v1700
    %1851 = vmatpush1.bf16.msra.mxu0 %v1699
    %1852 = vmatprep.subr.bf16.mxu0 %v1696
    %1853 = vmatpush1.bf16.msra.mxu0 %v1695
    %1854 = vmatprep.subr.bf16.mxu0 %v1692
    %1855 = vmatpush1.bf16.msra.mxu0 %v1691
    %1856 = vmatprep.subr.bf16.mxu0 %v1688
    %1857 = vmatpush1.bf16.msra.mxu0 %v1687
    %1858 = vmatprep.subr.bf16.mxu0 %v1684
    %1859 = vmatpush1.bf16.msra.mxu0 %v1683
    %1860 = vmatprep.subr.bf16.mxu0 %v1680
    %1861 = vmatpush1.bf16.msra.mxu0 %v1679
    %1862 = vmatprep.subr.bf16.mxu0 %v1740
    %1863 = vmatpush2.bf16.msra.mxu0 %v1739
    %1864 = vmatprep.subr.bf16.mxu0 %v1736
    %1865 = vmatpush2.bf16.msra.mxu0 %v1735
    %1866 = vmatprep.subr.bf16.mxu0 %v1732
    %1867 = vmatpush2.bf16.msra.mxu0 %v1731
    %1868 = vmatprep.subr.bf16.mxu0 %v1728
    %1869 = vmatpush2.bf16.msra.mxu0 %v1727
    %1870 = vmatprep.subr.bf16.mxu0 %v1724
    %1871 = vmatpush2.bf16.msra.mxu0 %v1723
    %1872 = vmatprep.subr.bf16.mxu0 %v1720
    %1873 = vmatpush2.bf16.msra.mxu0 %v1719
    %1874 = vmatprep.subr.bf16.mxu0 %v1716
    %1875 = vmatpush2.bf16.msra.mxu0 %v1715
    %1876 = vmatprep.subr.bf16.mxu0 %v1712
    %1877 = vmatpush2.bf16.msra.mxu0 %v1711
    %1878 = vmatprep.mubr.bf16.mxu0 %v1482
    %1879 = vmatmul.mubr.bf16.gmra.mxu0 %v1481
    %v1880 = vpop.f32.mrf.mxu0
    %v1881 = vadd.f32 0.0, %v1880
    %v1882 = vpop.f32.mrf.mxu0
    %v1883 = vadd.f32 0.0, %v1882
    %v1884 = vpop.f32.mrf.mxu0
    %v1885 = vpop.f32.mrf.mxu0
    %1886 = vdwg.mxu0
    %v1887 = vadd.f32 %v1359, %v1840
    %v1888 = vadd.f32 %v1361, %v1842
    %v1889 = vadd.f32 %v1400, %v1881
    %v1890 = vadd.f32 %v1402, %v1883
    %v1891 = vmax.f32 %v1887, %v1889
    %v1892 = vmax.f32 %v1888, %v1890
    %v1893 = vmax.f32 %v1891, %v1892
    %v1894 = vld [vmem:[%s4] sm:$0x1]
    %v1896 = vlaneseq
    %v1897 = vshrl.u32 %v1896, 7
    %v1898 = vsub.s32 0, %v1897
    %v1899 = vrot.slane %v1894, %v1898
    %v1901 = vadd.f32 %v1893, %v1899
    %v1902 = vmax.f32 %v1901, 0.0
    %v1903 = vpack.c.bf16 %v1902, %v1902
    %v1904 = vld [vmem:[%s5] sm:$0xf]
    %v1905 = vld [vmem:[%s5 + $0x4] sm:$0xf]
    %v1906 = vld [vmem:[%s5 + $0x8] sm:$0xf]
    %v1907 = vld [vmem:[%s5 + $0xc] sm:$0xf]
    %v1908 = vld [vmem:[%s5 + $0x10] sm:$0xf]
    %v1909 = vld [vmem:[%s5 + $0x14] sm:$0xf]
    %v1910 = vld [vmem:[%s5 + $0x18] sm:$0xf]
    %v1911 = vld [vmem:[%s5 + $0x1c] sm:$0xf]
    %v1912 = vld [vmem:[%s5 + $0x20] sm:$0xf]
    %v1913 = vld [vmem:[%s5 + $0x24] sm:$0xf]
    %v1914 = vld [vmem:[%s5 + $0x28] sm:$0xf]
    %v1915 = vld [vmem:[%s5 + $0x2c] sm:$0xf]
    %v1916 = vld [vmem:[%s5 + $0x30] sm:$0xf]
    %v1917 = vld [vmem:[%s5 + $0x34] sm:$0xf]
    %v1918 = vld [vmem:[%s5 + $0x38] sm:$0xf]
    %v1919 = vld [vmem:[%s5 + $0x3c] sm:$0xf]
    %s1920 = scalar_lea.vmem %s5, 64
    %v1921 = vld [vmem:[%s1920] sm:$0xf]
    %v1922 = vld [vmem:[%s1920 + $0x4] sm:$0xf]
    %v1923 = vld [vmem:[%s1920 + $0x8] sm:$0xf]
    %v1924 = vld [vmem:[%s1920 + $0xc] sm:$0xf]
    %v1925 = vld [vmem:[%s1920 + $0x10] sm:$0xf]
    %v1926 = vld [vmem:[%s1920 + $0x14] sm:$0xf]
    %v1927 = vld [vmem:[%s1920 + $0x18] sm:$0xf]
    %v1928 = vld [vmem:[%s1920 + $0x1c] sm:$0xf]
    %v1929 = vld [vmem:[%s1920 + $0x20] sm:$0xf]
    %v1930 = vld [vmem:[%s1920 + $0x24] sm:$0xf]
    %v1931 = vld [vmem:[%s1920 + $0x28] sm:$0xf]
    %v1932 = vld [vmem:[%s1920 + $0x2c] sm:$0xf]
    %v1933 = vld [vmem:[%s1920 + $0x30] sm:$0xf]
    %v1934 = vld [vmem:[%s1920 + $0x34] sm:$0xf]
    %v1935 = vld [vmem:[%s1920 + $0x38] sm:$0xf]
    %v1936 = vld [vmem:[%s1920 + $0x3c] sm:$0xf]
    %v1938 = vrot.slane %v1903, 1
    %v1956 = vunpack.c.l.b16 %v1921
    %v1957 = vunpack.c.l.b16 %v1922
    %v1958 = vunpack.c.l.b16 %v1923
    %v1959 = vunpack.c.l.b16 %v1924
    %v1960 = vunpack.c.l.b16 %v1925
    %v1961 = vunpack.c.l.b16 %v1926
    %v1962 = vunpack.c.l.b16 %v1927
    %v1963 = vunpack.c.l.b16 %v1928
    %v1964 = vunpack.c.l.b16 %v1929
    %v1965 = vunpack.c.l.b16 %v1930
    %v1966 = vunpack.c.l.b16 %v1931
    %v1967 = vunpack.c.l.b16 %v1932
    %v1968 = vunpack.c.l.b16 %v1933
    %v1969 = vunpack.c.l.b16 %v1934
    %v1970 = vunpack.c.l.b16 %v1935
    %v1971 = vunpack.c.l.b16 %v1936
    %v1972 = vpack.c.b16 %v1957, %v1956
    %v1973 = vpack.c.b16 %v1959, %v1958
    %v1974 = vpack.c.b16 %v1961, %v1960
    %v1975 = vpack.c.b16 %v1963, %v1962
    %v1976 = vpack.c.b16 %v1965, %v1964
    %v1977 = vpack.c.b16 %v1967, %v1966
    %v1978 = vpack.c.b16 %v1969, %v1968
    %v1979 = vpack.c.b16 %v1971, %v1970
    %1988 = vmatprep.subr.bf16.mxu0 0
    %1989 = vmatpush1.bf16.msra.mxu0 %v1979
    %1990 = vmatprep.subr.bf16.mxu0 0
    %1991 = vmatpush1.bf16.msra.mxu0 %v1978
    %1992 = vmatprep.subr.bf16.mxu0 0
    %1993 = vmatpush1.bf16.msra.mxu0 %v1977
    %1994 = vmatprep.subr.bf16.mxu0 0
    %1995 = vmatpush1.bf16.msra.mxu0 %v1976
    %1996 = vmatprep.subr.bf16.mxu0 0
    %1997 = vmatpush1.bf16.msra.mxu0 %v1975
    %1998 = vmatprep.subr.bf16.mxu0 0
    %1999 = vmatpush1.bf16.msra.mxu0 %v1974
    %2000 = vmatprep.subr.bf16.mxu0 0
    %2001 = vmatpush1.bf16.msra.mxu0 %v1973
    %2002 = vmatprep.subr.bf16.mxu0 0
    %2003 = vmatpush1.bf16.msra.mxu0 %v1972
    %2004 = vmatprep.subr.bf16.mxu0 0
    %2005 = vmatpush2.bf16.msra.mxu0 0
    %2006 = vmatprep.subr.bf16.mxu0 0
    %2007 = vmatpush2.bf16.msra.mxu0 0
    %2008 = vmatprep.subr.bf16.mxu0 0
    %2009 = vmatpush2.bf16.msra.mxu0 0
    %2010 = vmatprep.subr.bf16.mxu0 0
    %2011 = vmatpush2.bf16.msra.mxu0 0
    %2012 = vmatprep.subr.bf16.mxu0 0
    %2013 = vmatpush2.bf16.msra.mxu0 0
    %2014 = vmatprep.subr.bf16.mxu0 0
    %2015 = vmatpush2.bf16.msra.mxu0 0
    %2016 = vmatprep.subr.bf16.mxu0 0
    %2017 = vmatpush2.bf16.msra.mxu0 0
    %2018 = vmatprep.subr.bf16.mxu0 0
    %2019 = vmatpush2.bf16.msra.mxu0 0
    %2020 = vmatprep.mubr.bf16.mxu0 0
    %2021 = vmatmul.mubr.bf16.gmra.mxu0 %v1938
    %v2022 = vpop.f32.mrf.mxu0
    %v2023 = vadd.f32 0.0, %v2022
    %v2024 = vpop.f32.mrf.mxu0
    %v2025 = vpop.f32.mrf.mxu0
    %v2026 = vpop.f32.mrf.mxu0
    %2027 = vdwg.mxu0
    %v2044 = vunpack.c.l.b16 %v1904
    %v2045 = vunpack.c.l.b16 %v1905
    %v2046 = vunpack.c.l.b16 %v1906
    %v2047 = vunpack.c.l.b16 %v1907
    %v2048 = vunpack.c.l.b16 %v1908
    %v2049 = vunpack.c.l.b16 %v1909
    %v2050 = vunpack.c.l.b16 %v1910
    %v2051 = vunpack.c.l.b16 %v1911
    %v2052 = vunpack.c.l.b16 %v1912
    %v2053 = vunpack.c.l.b16 %v1913
    %v2054 = vunpack.c.l.b16 %v1914
    %v2055 = vunpack.c.l.b16 %v1915
    %v2056 = vunpack.c.l.b16 %v1916
    %v2057 = vunpack.c.l.b16 %v1917
    %v2058 = vunpack.c.l.b16 %v1918
    %v2059 = vunpack.c.l.b16 %v1919
    %v2060 = vpack.c.b16 %v2045, %v2044
    %v2061 = vpack.c.b16 %v2047, %v2046
    %v2062 = vpack.c.b16 %v2049, %v2048
    %v2063 = vpack.c.b16 %v2051, %v2050
    %v2064 = vpack.c.b16 %v2053, %v2052
    %v2065 = vpack.c.b16 %v2055, %v2054
    %v2066 = vpack.c.b16 %v2057, %v2056
    %v2067 = vpack.c.b16 %v2059, %v2058
    %2076 = vmatprep.subr.bf16.mxu0 0
    %2077 = vmatpush1.bf16.msra.mxu0 %v2067
    %2078 = vmatprep.subr.bf16.mxu0 0
    %2079 = vmatpush1.bf16.msra.mxu0 %v2066
    %2080 = vmatprep.subr.bf16.mxu0 0
    %2081 = vmatpush1.bf16.msra.mxu0 %v2065
    %2082 = vmatprep.subr.bf16.mxu0 0
    %2083 = vmatpush1.bf16.msra.mxu0 %v2064
    %2084 = vmatprep.subr.bf16.mxu0 0
    %2085 = vmatpush1.bf16.msra.mxu0 %v2063
    %2086 = vmatprep.subr.bf16.mxu0 0
    %2087 = vmatpush1.bf16.msra.mxu0 %v2062
    %2088 = vmatprep.subr.bf16.mxu0 0
    %2089 = vmatpush1.bf16.msra.mxu0 %v2061
    %2090 = vmatprep.subr.bf16.mxu0 0
    %2091 = vmatpush1.bf16.msra.mxu0 %v2060
    %2092 = vmatprep.subr.bf16.mxu0 0
    %2093 = vmatpush2.bf16.msra.mxu0 0
    %2094 = vmatprep.subr.bf16.mxu0 0
    %2095 = vmatpush2.bf16.msra.mxu0 0
    %2096 = vmatprep.subr.bf16.mxu0 0
    %2097 = vmatpush2.bf16.msra.mxu0 0
    %2098 = vmatprep.subr.bf16.mxu0 0
    %2099 = vmatpush2.bf16.msra.mxu0 0
    %2100 = vmatprep.subr.bf16.mxu0 0
    %2101 = vmatpush2.bf16.msra.mxu0 0
    %2102 = vmatprep.subr.bf16.mxu0 0
    %2103 = vmatpush2.bf16.msra.mxu0 0
    %2104 = vmatprep.subr.bf16.mxu0 0
    %2105 = vmatpush2.bf16.msra.mxu0 0
    %2106 = vmatprep.subr.bf16.mxu0 0
    %2107 = vmatpush2.bf16.msra.mxu0 0
    %2108 = vmatprep.mubr.bf16.mxu0 0
    %2109 = vmatmul.mubr.bf16.gmra.mxu0 %v1903
    %v2110 = vpop.f32.mrf.mxu0
    %v2111 = vadd.f32 %v2023, %v2110
    %v2112 = vpop.f32.mrf.mxu0
    %v2113 = vpop.f32.mrf.mxu0
    %v2114 = vpop.f32.mrf.mxu0
    %2115 = vdwg.mxu0
    %s2116 = scalar_lea.vmem %s5, 128
    %v2117 = vld [vmem:[%s2116] sm:$0xf]
    %v2118 = vld [vmem:[%s2116 + $0x4] sm:$0xf]
    %v2119 = vld [vmem:[%s2116 + $0x8] sm:$0xf]
    %v2120 = vld [vmem:[%s2116 + $0xc] sm:$0xf]
    %v2121 = vld [vmem:[%s2116 + $0x10] sm:$0xf]
    %v2122 = vld [vmem:[%s2116 + $0x14] sm:$0xf]
    %v2123 = vld [vmem:[%s2116 + $0x18] sm:$0xf]
    %v2124 = vld [vmem:[%s2116 + $0x1c] sm:$0xf]
    %v2125 = vld [vmem:[%s2116 + $0x20] sm:$0xf]
    %v2126 = vld [vmem:[%s2116 + $0x24] sm:$0xf]
    %v2127 = vld [vmem:[%s2116 + $0x28] sm:$0xf]
    %v2128 = vld [vmem:[%s2116 + $0x2c] sm:$0xf]
    %v2129 = vld [vmem:[%s2116 + $0x30] sm:$0xf]
    %v2130 = vld [vmem:[%s2116 + $0x34] sm:$0xf]
    %v2131 = vld [vmem:[%s2116 + $0x38] sm:$0xf]
    %v2132 = vld [vmem:[%s2116 + $0x3c] sm:$0xf]
    %v2133 = vrot.slane %v1903, 2
    %v2151 = vunpack.c.l.b16 %v2117
    %v2152 = vunpack.c.l.b16 %v2118
    %v2153 = vunpack.c.l.b16 %v2119
    %v2154 = vunpack.c.l.b16 %v2120
    %v2155 = vunpack.c.l.b16 %v2121
    %v2156 = vunpack.c.l.b16 %v2122
    %v2157 = vunpack.c.l.b16 %v2123
    %v2158 = vunpack.c.l.b16 %v2124
    %v2159 = vunpack.c.l.b16 %v2125
    %v2160 = vunpack.c.l.b16 %v2126
    %v2161 = vunpack.c.l.b16 %v2127
    %v2162 = vunpack.c.l.b16 %v2128
    %v2163 = vunpack.c.l.b16 %v2129
    %v2164 = vunpack.c.l.b16 %v2130
    %v2165 = vunpack.c.l.b16 %v2131
    %v2166 = vunpack.c.l.b16 %v2132
    %v2167 = vpack.c.b16 %v2152, %v2151
    %v2168 = vpack.c.b16 %v2154, %v2153
    %v2169 = vpack.c.b16 %v2156, %v2155
    %v2170 = vpack.c.b16 %v2158, %v2157
    %v2171 = vpack.c.b16 %v2160, %v2159
    %v2172 = vpack.c.b16 %v2162, %v2161
    %v2173 = vpack.c.b16 %v2164, %v2163
    %v2174 = vpack.c.b16 %v2166, %v2165
    %2183 = vmatprep.subr.bf16.mxu0 0
    %2184 = vmatpush1.bf16.msra.mxu0 %v2174
    %2185 = vmatprep.subr.bf16.mxu0 0
    %2186 = vmatpush1.bf16.msra.mxu0 %v2173
    %2187 = vmatprep.subr.bf16.mxu0 0
    %2188 = vmatpush1.bf16.msra.mxu0 %v2172
    %2189 = vmatprep.subr.bf16.mxu0 0
    %2190 = vmatpush1.bf16.msra.mxu0 %v2171
    %2191 = vmatprep.subr.bf16.mxu0 0
    %2192 = vmatpush1.bf16.msra.mxu0 %v2170
    %2193 = vmatprep.subr.bf16.mxu0 0
    %2194 = vmatpush1.bf16.msra.mxu0 %v2169
    %2195 = vmatprep.subr.bf16.mxu0 0
    %2196 = vmatpush1.bf16.msra.mxu0 %v2168
    %2197 = vmatprep.subr.bf16.mxu0 0
    %2198 = vmatpush1.bf16.msra.mxu0 %v2167
    %2199 = vmatprep.subr.bf16.mxu0 0
    %2200 = vmatpush2.bf16.msra.mxu0 0
    %2201 = vmatprep.subr.bf16.mxu0 0
    %2202 = vmatpush2.bf16.msra.mxu0 0
    %2203 = vmatprep.subr.bf16.mxu0 0
    %2204 = vmatpush2.bf16.msra.mxu0 0
    %2205 = vmatprep.subr.bf16.mxu0 0
    %2206 = vmatpush2.bf16.msra.mxu0 0
    %2207 = vmatprep.subr.bf16.mxu0 0
    %2208 = vmatpush2.bf16.msra.mxu0 0
    %2209 = vmatprep.subr.bf16.mxu0 0
    %2210 = vmatpush2.bf16.msra.mxu0 0
    %2211 = vmatprep.subr.bf16.mxu0 0
    %2212 = vmatpush2.bf16.msra.mxu0 0
    %2213 = vmatprep.subr.bf16.mxu0 0
    %2214 = vmatpush2.bf16.msra.mxu0 0
    %2215 = vmatprep.mubr.bf16.mxu0 0
    %2216 = vmatmul.mubr.bf16.gmra.mxu0 %v2133
    %v2217 = vpop.f32.mrf.mxu0
    %v2218 = vadd.f32 0.0, %v2217
    %v2219 = vpop.f32.mrf.mxu0
    %v2220 = vpop.f32.mrf.mxu0
    %v2221 = vpop.f32.mrf.mxu0
    %2222 = vdwg.mxu0
    %v2223 = vadd.f32 %v2111, %v2218
    %s2224 = scalar_lea.vmem %s5, 192
    %v2225 = vld [vmem:[%s2224] sm:$0xf]
    %v2226 = vld [vmem:[%s2224 + $0x4] sm:$0xf]
    %v2227 = vld [vmem:[%s2224 + $0x8] sm:$0xf]
    %v2228 = vld [vmem:[%s2224 + $0xc] sm:$0xf]
    %v2229 = vld [vmem:[%s2224 + $0x10] sm:$0xf]
    %v2230 = vld [vmem:[%s2224 + $0x14] sm:$0xf]
    %v2231 = vld [vmem:[%s2224 + $0x18] sm:$0xf]
    %v2232 = vld [vmem:[%s2224 + $0x1c] sm:$0xf]
    %v2233 = vld [vmem:[%s2224 + $0x20] sm:$0xf]
    %v2234 = vld [vmem:[%s2224 + $0x24] sm:$0xf]
    %v2235 = vld [vmem:[%s2224 + $0x28] sm:$0xf]
    %v2236 = vld [vmem:[%s2224 + $0x2c] sm:$0xf]
    %v2237 = vld [vmem:[%s2224 + $0x30] sm:$0xf]
    %v2238 = vld [vmem:[%s2224 + $0x34] sm:$0xf]
    %v2239 = vld [vmem:[%s2224 + $0x38] sm:$0xf]
    %v2240 = vld [vmem:[%s2224 + $0x3c] sm:$0xf]
    %v2241 = vrot.slane %v1903, 3
    %v2259 = vunpack.c.l.b16 %v2225
    %v2260 = vunpack.c.l.b16 %v2226
    %v2261 = vunpack.c.l.b16 %v2227
    %v2262 = vunpack.c.l.b16 %v2228
    %v2263 = vunpack.c.l.b16 %v2229
    %v2264 = vunpack.c.l.b16 %v2230
    %v2265 = vunpack.c.l.b16 %v2231
    %v2266 = vunpack.c.l.b16 %v2232
    %v2267 = vunpack.c.l.b16 %v2233
    %v2268 = vunpack.c.l.b16 %v2234
    %v2269 = vunpack.c.l.b16 %v2235
    %v2270 = vunpack.c.l.b16 %v2236
    %v2271 = vunpack.c.l.b16 %v2237
    %v2272 = vunpack.c.l.b16 %v2238
    %v2273 = vunpack.c.l.b16 %v2239
    %v2274 = vunpack.c.l.b16 %v2240
    %v2275 = vpack.c.b16 %v2260, %v2259
    %v2276 = vpack.c.b16 %v2262, %v2261
    %v2277 = vpack.c.b16 %v2264, %v2263
    %v2278 = vpack.c.b16 %v2266, %v2265
    %v2279 = vpack.c.b16 %v2268, %v2267
    %v2280 = vpack.c.b16 %v2270, %v2269
    %v2281 = vpack.c.b16 %v2272, %v2271
    %v2282 = vpack.c.b16 %v2274, %v2273
    %2291 = vmatprep.subr.bf16.mxu0 0
    %2292 = vmatpush1.bf16.msra.mxu0 %v2282
    %2293 = vmatprep.subr.bf16.mxu0 0
    %2294 = vmatpush1.bf16.msra.mxu0 %v2281
    %2295 = vmatprep.subr.bf16.mxu0 0
    %2296 = vmatpush1.bf16.msra.mxu0 %v2280
    %2297 = vmatprep.subr.bf16.mxu0 0
    %2298 = vmatpush1.bf16.msra.mxu0 %v2279
    %2299 = vmatprep.subr.bf16.mxu0 0
    %2300 = vmatpush1.bf16.msra.mxu0 %v2278
    %2301 = vmatprep.subr.bf16.mxu0 0
    %2302 = vmatpush1.bf16.msra.mxu0 %v2277
    %2303 = vmatprep.subr.bf16.mxu0 0
    %2304 = vmatpush1.bf16.msra.mxu0 %v2276
    %2305 = vmatprep.subr.bf16.mxu0 0
    %2306 = vmatpush1.bf16.msra.mxu0 %v2275
    %2307 = vmatprep.subr.bf16.mxu0 0
    %2308 = vmatpush2.bf16.msra.mxu0 0
    %2309 = vmatprep.subr.bf16.mxu0 0
    %2310 = vmatpush2.bf16.msra.mxu0 0
    %2311 = vmatprep.subr.bf16.mxu0 0
    %2312 = vmatpush2.bf16.msra.mxu0 0
    %2313 = vmatprep.subr.bf16.mxu0 0
    %2314 = vmatpush2.bf16.msra.mxu0 0
    %2315 = vmatprep.subr.bf16.mxu0 0
    %2316 = vmatpush2.bf16.msra.mxu0 0
    %2317 = vmatprep.subr.bf16.mxu0 0
    %2318 = vmatpush2.bf16.msra.mxu0 0
    %2319 = vmatprep.subr.bf16.mxu0 0
    %2320 = vmatpush2.bf16.msra.mxu0 0
    %2321 = vmatprep.subr.bf16.mxu0 0
    %2322 = vmatpush2.bf16.msra.mxu0 0
    %2323 = vmatprep.mubr.bf16.mxu0 0
    %2324 = vmatmul.mubr.bf16.gmra.mxu0 %v2241
    %v2325 = vpop.f32.mrf.mxu0
    %v2326 = vadd.f32 0.0, %v2325
    %v2327 = vpop.f32.mrf.mxu0
    %v2328 = vpop.f32.mrf.mxu0
    %v2329 = vpop.f32.mrf.mxu0
    %2330 = vdwg.mxu0
    %v2331 = vadd.f32 %v2223, %v2326
    %v2332 = vld [vmem:[%s6] sm:$0x1]
    %v2334 = vlaneseq
    %v2335 = vshrl.u32 %v2334, 7
    %v2336 = vsub.s32 0, %v2335
    %v2337 = vrot.slane %v2332, %v2336
    %v2339 = vadd.f32 %v2331, %v2337
    %2340 = vst [vmem:[#allocation3] sm:$0x3] %v2339
    // Predicated region
    $region30: #{cnn_forward.1} parent=1 // pred_check
      _
    $region31: #{cnn_forward.1} parent=1 // pred_check_branch
      %2342 = sbr.rel (0) target = $region33
    $region32: #{cnn_forward.1} parent=1 // pred_region
      %s2344 = ssub.s32 32, 32
      %2345 = vsyncadd [#allocation4], %s2344
      %s2347 = sshll.u32 [#allocation3], 4
      %s2348 = int_to_ptr.vmem [resolvable:$true] %s2347
      %2350 = dma.vmem_to_hbm [thread:$0]  %s2348, 32, %s7, [#allocation4]
    $region33: #{cnn_forward.1} parent=1 // pred_fallthru
      _
    // Predicated region
    $region34: #{cnn_forward.1} parent=1 // pred_check
      _
    $region35: #{cnn_forward.1} parent=1 // pred_check_branch
      %2352 = sbr.rel (0) target = $region37
    $region36: #{cnn_forward.1} parent=1 // pred_region
      %2353 = dma.done [#allocation4], 32
    $region37: #{cnn_forward.1} parent=1 // pred_fallthru
      _
    %2354 = vsyncpa [#allocation4], 1

</llo_original>
